<compile_context>
chip_gen: v7x
topology: tpu7x:2x2x1
jax: 0.10.0
libtpu: 0.0.40
codegen_flags: <defaults>
</compile_context>

<pallas_src>
import functools

import jax
import jax.numpy as jnp
from jax import lax
from jax.experimental import pallas as pl
from jax.experimental.pallas import tpu as pltpu


_VMEM_LIMIT = 64 * 1024 * 1024   # explicit limit that also fits v7x's 64 MiB


# ------------------------------- helpers ----------------------------------- #
def _pick_tile(dim, target, align):
    """Largest tile <= target that divides dim and is a multiple of align,
    falling back to the full dimension (always a legal block size)."""
    if dim <= target:
        return dim
    t = (target // align) * align
    while t >= align:
        if dim % t == 0:
            return t
        t -= align
    return dim


# ----------------------------- linear kernel ------------------------------- #
def _linear_kernel(x_ref, w_ref, b_ref, o_ref, acc_ref):
    k = pl.program_id(2)

    @pl.when(k == 0)
    def _():
        acc_ref[...] = jnp.zeros_like(acc_ref)

    # bf16 x bf16 -> fp32 accumulate on the MXU; weight is already (K, N).
    acc_ref[...] += jnp.dot(x_ref[...], w_ref[...],
                            preferred_element_type=jnp.float32)

    @pl.when(k == pl.num_programs(2) - 1)
    def _():
        o_ref[...] = (acc_ref[...] + b_ref[...]).astype(o_ref.dtype)


def pallas_linear(x, w_t, b, *, out_dtype, tm=256, tn=256, tk=512):
    """x: (M, K) bf16, w_t: (K, N) bf16 (pre-transposed), b: (N,) f32."""
    M, K = x.shape
    Kw, N = w_t.shape
    assert K == Kw
    tm_ = _pick_tile(M, tm, 8)
    tn_ = _pick_tile(N, tn, 128)
    tk_ = _pick_tile(K, tk, 128)
    grid = (M // tm_, N // tn_, K // tk_)
    return pl.pallas_call(
        _linear_kernel,
        out_shape=jax.ShapeDtypeStruct((M, N), out_dtype),
        grid=grid,
        in_specs=[
            pl.BlockSpec((tm_, tk_), lambda i, j, k: (i, k)),
            pl.BlockSpec((tk_, tn_), lambda i, j, k: (k, j)),
            pl.BlockSpec((1, tn_), lambda i, j, k: (0, j)),
        ],
        out_specs=pl.BlockSpec((tm_, tn_), lambda i, j, k: (i, j)),
        scratch_shapes=[pltpu.VMEM((tm_, tn_), jnp.float32)],
        compiler_params=pltpu.CompilerParams(
            dimension_semantics=("parallel", "parallel", "arbitrary"),
            vmem_limit_bytes=_VMEM_LIMIT),
    )(x, w_t, b.reshape(1, N).astype(jnp.float32))


# ------------------------------- RoPE kernel -------------------------------- #
def _rope_kernel(x_ref, cos_ref, sin_ref, o_ref, *, scale):
    x = x_ref[...].astype(jnp.float32)                # (T, D)
    d = x.shape[-1]
    rot = pltpu.roll(x, d // 2, 1)                    # lane rotate: [x2, x1]
    y = x * cos_ref[...] + rot * sin_ref[...]         # sin is sign-folded
    if scale != 1.0:                                  # fold 1/sqrt(d) into q
        y = y * scale
    o_ref[...] = y.astype(o_ref.dtype)


def pallas_rope(x2d, cos, sin_folded, *, batch, seq_len, n_heads, head_dim,
                scale=1.0, tile=256):
    """x2d: (B*S, n_heads*D) bf16; cos/sin_folded: (S, D) f32."""
    B, S, D = batch, seq_len, head_dim
    T = _pick_tile(S, tile, 8)
    assert S % T == 0
    nb = S // T
    kern = functools.partial(_rope_kernel, scale=scale)
    return pl.pallas_call(
        kern,
        out_shape=jax.ShapeDtypeStruct(x2d.shape, jnp.bfloat16),
        grid=(B, nb, n_heads),        # heads innermost: cos/sin stay resident
        in_specs=[
            pl.BlockSpec((T, D), lambda b, s, h: (b * nb + s, h)),
            pl.BlockSpec((T, D), lambda b, s, h: (s, 0)),
            pl.BlockSpec((T, D), lambda b, s, h: (s, 0)),
        ],
        out_specs=pl.BlockSpec((T, D), lambda b, s, h: (b * nb + s, h)),
        compiler_params=pltpu.CompilerParams(
            dimension_semantics=("parallel", "parallel", "parallel"),
            vmem_limit_bytes=_VMEM_LIMIT),
    )(x2d, cos, sin_folded)


# --------------------------- flash attention kernel ------------------------- #
def _flash_kernel(q_ref, k_ref, v_ref, o_ref, s_sc, m_sc, l_sc, acc_sc):
    qi = pl.program_id(2)
    ki = pl.program_id(3)

    @pl.when(ki == 0)
    def _():
        m_sc[...] = jnp.full_like(m_sc, -1e30)
        l_sc[...] = jnp.zeros_like(l_sc)
        acc_sc[...] = jnp.zeros_like(acc_sc)

    # Causal tile skip: q-tile and kv-tile sizes are equal, so tile (qi, ki)
    # is fully masked iff ki > qi.
    @pl.when(ki <= qi)
    def _():
        # q already carries the 1/sqrt(head_dim) scaling (folded into RoPE).
        s_sc[...] = lax.dot_general(
            q_ref[...], k_ref[...], (((1,), (1,)), ((), ())),
            preferred_element_type=jnp.float32)

        # Build the iota mask only on the diagonal tile.
        @pl.when(ki == qi)
        def _():
            tq, tk = s_sc.shape
            row = lax.broadcasted_iota(jnp.int32, (tq, tk), 0)
            col = lax.broadcasted_iota(jnp.int32, (tq, tk), 1)
            s_sc[...] = jnp.where(col <= row, s_sc[...], -1e30)

        s = s_sc[...]
        m_prev = m_sc[...]
        m_new = jnp.maximum(m_prev, jnp.max(s, axis=-1, keepdims=True))
        alpha = jnp.exp(m_prev - m_new)
        p = jnp.exp(s - m_new)
        l_sc[...] = alpha * l_sc[...] + jnp.sum(p, axis=-1, keepdims=True)
        acc_sc[...] = alpha * acc_sc[...] + jnp.dot(
            p.astype(v_ref.dtype), v_ref[...],
            preferred_element_type=jnp.float32)
        m_sc[...] = m_new

    @pl.when(ki == pl.num_programs(3) - 1)
    def _():
        inv_l = pl.reciprocal(l_sc[...], approx=True)
        o_ref[...] = (acc_sc[...] * inv_l).astype(o_ref.dtype)


def pallas_flash_attention(q2d, k2d, v2d, *, batch, seq_len, num_heads,
                           num_kv_heads, head_dim, tile=128):
    """q2d: (B*S, H*D); k2d/v2d: (B*S, KVH*D); all bf16. Returns (B*S, H*D)."""
    B, S, H, KVH, D = batch, seq_len, num_heads, num_kv_heads, head_dim
    g = H // KVH
    T = _pick_tile(S, tile, 8)
    assert S % T == 0
    nq = S // T

    q_map = lambda b, h, qi, ki: (b * nq + qi, h)
    # Clamp the KV tile index on skipped (above-diagonal) tiles so they map to
    # the previously fetched block -> no extra DMA is issued for them.
    kv_map = lambda b, h, qi, ki: (b * nq + jnp.minimum(ki, qi), h // g)
    o_map = lambda b, h, qi, ki: (b * nq + qi, h)

    return pl.pallas_call(
        _flash_kernel,
        out_shape=jax.ShapeDtypeStruct((B * S, H * D), q2d.dtype),
        grid=(B, H, nq, nq),
        in_specs=[
            pl.BlockSpec((T, D), q_map),
            pl.BlockSpec((T, D), kv_map),
            pl.BlockSpec((T, D), kv_map),
        ],
        out_specs=pl.BlockSpec((T, D), o_map),
        scratch_shapes=[
            pltpu.VMEM((T, T), jnp.float32),   # scores
            pltpu.VMEM((T, 1), jnp.float32),   # running max
            pltpu.VMEM((T, 1), jnp.float32),   # running sum
            pltpu.VMEM((T, D), jnp.float32),   # output accumulator
        ],
        compiler_params=pltpu.CompilerParams(
            dimension_semantics=("parallel", "parallel", "parallel", "arbitrary"),
            vmem_limit_bytes=_VMEM_LIMIT),
    )(q2d, k2d, v2d)


# --------------------------- module-level wrapper --------------------------- #
class Qwen2AttentionPallas:
    def __init__(self, hidden_size, num_attention_heads, num_key_value_heads,
                 head_dim=None, key=None):
        self.hidden_size = hidden_size
        self.num_heads = num_attention_heads
        self.num_kv_heads = num_key_value_heads
        self.head_dim = head_dim or hidden_size // num_attention_heads
        self.num_key_value_groups = num_attention_heads // num_key_value_heads
        self.scaling = self.head_dim ** (-0.5)

        if key is None:
            key = jax.random.PRNGKey(0)
        ks = jax.random.split(key, 7)
        d = self.head_dim
        scale = 0.02
        bf = jnp.bfloat16
        # Weights stored pre-transposed (in_features, out_features) and in bf16
        # so the matmul kernels see a layout-native, half-width RHS (no .T).
        self.wq_t = (scale * jax.random.normal(ks[0], (hidden_size, self.num_heads * d), jnp.float32)).astype(bf)
        self.bq = scale * jax.random.normal(ks[1], (self.num_heads * d,), jnp.float32)
        self.wk_t = (scale * jax.random.normal(ks[2], (hidden_size, self.num_kv_heads * d), jnp.float32)).astype(bf)
        self.bk = scale * jax.random.normal(ks[3], (self.num_kv_heads * d,), jnp.float32)
        self.wv_t = (scale * jax.random.normal(ks[4], (hidden_size, self.num_kv_heads * d), jnp.float32)).astype(bf)
        self.bv = scale * jax.random.normal(ks[5], (self.num_kv_heads * d,), jnp.float32)
        self.wo_t = (scale * jax.random.normal(ks[6], (self.num_heads * d, hidden_size), jnp.float32)).astype(bf)
        self.bo = jnp.zeros((hidden_size,), jnp.float32)   # o_proj has no bias

    def __call__(self, hidden_states, position_embeddings):
        # hidden_states: (B, S, hidden); position_embeddings = (cos, sin), each (S, head_dim)
        cos, sin = position_embeddings
        B, S, Hd = hidden_states.shape
        D = self.head_dim
        assert D % 128 == 0, "kernels assume head_dim is a multiple of 128 (Qwen2 uses 128)"

        # Flat (B*S, features) layout end to end; heads are selected through
        # BlockSpec index maps, so there are no HBM transposes.
        x2d = hidden_states.reshape(B * S, Hd).astype(jnp.bfloat16)

        q2d = pallas_linear(x2d, self.wq_t, self.bq, out_dtype=jnp.bfloat16)
        k2d = pallas_linear(x2d, self.wk_t, self.bk, out_dtype=jnp.bfloat16)
        v2d = pallas_linear(x2d, self.wv_t, self.bv, out_dtype=jnp.bfloat16)

        # rotate_half via lane-roll + sign-folded sin (tiny, computed once).
        sin_folded = jnp.concatenate([-sin[:, : D // 2], sin[:, D // 2:]], axis=-1)
        q2d = pallas_rope(q2d, cos, sin_folded, batch=B, seq_len=S,
                          n_heads=self.num_heads, head_dim=D, scale=self.scaling)
        k2d = pallas_rope(k2d, cos, sin_folded, batch=B, seq_len=S,
                          n_heads=self.num_kv_heads, head_dim=D, scale=1.0)

        attn2d = pallas_flash_attention(
            q2d, k2d, v2d, batch=B, seq_len=S, num_heads=self.num_heads,
            num_kv_heads=self.num_kv_heads, head_dim=D)

        out = pallas_linear(attn2d, self.wo_t, self.bo, out_dtype=jnp.float32)
        return out.reshape(B, S, Hd)


# ------------------------------ pure-JAX ref -------------------------------- #
def _reference(module, hidden_states, cos, sin):
    bf = jnp.bfloat16
    B, S, Hd = hidden_states.shape
    D = module.head_dim
    H, KVH = module.num_heads, module.num_kv_heads
    x = hidden_states.reshape(B * S, Hd)

    def mm(a, b):
        return jnp.dot(a.astype(bf), b.astype(bf), preferred_element_type=jnp.float32)

    q = (mm(x, module.wq_t) + module.bq).astype(bf).astype(jnp.float32)
    k = (mm(x, module.wk_t) + module.bk).astype(bf).astype(jnp.float32)
    v = (mm(x, module.wv_t) + module.bv).astype(bf)

    q = q.reshape(B, S, H, D).transpose(0, 2, 1, 3)
    k = k.reshape(B, S, KVH, D).transpose(0, 2, 1, 3)
    v = v.reshape(B, S, KVH, D).transpose(0, 2, 1, 3)

    def rope(t):
        t1, t2 = t[..., : D // 2], t[..., D // 2:]
        rot = jnp.concatenate([-t2, t1], axis=-1)
        return t * cos[None, None] + rot * sin[None, None]

    q = (rope(q) * module.scaling).astype(bf)
    k = rope(k).astype(bf)

    g = module.num_key_value_groups
    k = jnp.repeat(k, g, axis=1)
    v = jnp.repeat(v, g, axis=1)

    scores = jnp.einsum("bhqd,bhkd->bhqk", q, k, preferred_element_type=jnp.float32)
    mask = jnp.tril(jnp.ones((S, S), dtype=bool))
    scores = jnp.where(mask[None, None], scores, -1e30)
    p = jax.nn.softmax(scores, axis=-1)
    attn = jnp.einsum("bhqk,bhkd->bhqd", p.astype(bf), v,
                      preferred_element_type=jnp.float32)
    attn = attn.astype(bf).transpose(0, 2, 1, 3).reshape(B * S, H * D)
    out = mm(attn, module.wo_t)
    return out.reshape(B, S, Hd)


def make_rope(seq_len, head_dim, theta=10000.0):
    inv_freq = 1.0 / (theta ** (jnp.arange(0, head_dim, 2, dtype=jnp.float32) / head_dim))
    pos = jnp.arange(seq_len, dtype=jnp.float32)
    freqs = jnp.outer(pos, inv_freq)                     # (S, D/2)
    emb = jnp.concatenate([freqs, freqs], axis=-1)       # (S, D)
    return jnp.cos(emb), jnp.sin(emb)


if __name__ == "__main__":
    # Small but representative shapes: head_dim=128 matches real Qwen2 and the
    # kernel's lane-alignment requirement; S=256 exercises multiple flash tiles.
    B, S, HIDDEN = 2, 256, 512
    NUM_HEADS, NUM_KV_HEADS = 4, 2
    HEAD_DIM = HIDDEN // NUM_HEADS   # 128

    key = jax.random.PRNGKey(0)
    k_param, k_x = jax.random.split(key)

    module = Qwen2AttentionPallas(HIDDEN, NUM_HEADS, NUM_KV_HEADS, HEAD_DIM, key=k_param)
    hidden_states = jax.random.normal(k_x, (B, S, HIDDEN), jnp.float32)
    cos, sin = make_rope(S, HEAD_DIM)

    out = module(hidden_states, (cos, sin))
    out = jax.block_until_ready(out)

    ref = _reference(module, hidden_states, cos, sin)
    assert out.shape == (B, S, HIDDEN)
    max_err = jnp.max(jnp.abs(out - ref))
    assert jnp.allclose(out, ref, atol=2e-2, rtol=2e-2), (
        f"mismatch vs pure-JAX reference (max |err| = {max_err})")

    # TODO(synk): KV-cache update (past_key_value / cache_position), attention
    #             dropout and arbitrary attention_mask are not modeled; this is
    #             the eval-time causal prefill forward.
    print("KERNEL_OK")
</pallas_src>

<mosaic_0001>
module attributes {stable_mosaic.version = 11 : i64} {
  func.func @_linear_kernel(%arg0: i32, %arg1: i32, %arg2: i32, %arg3: memref<256x512xbf16, #tpu.memory_space<vmem>>, %arg4: memref<512x256xbf16, #tpu.memory_space<vmem>>, %arg5: memref<1x256xf32, #tpu.memory_space<vmem>>, %arg6: memref<256x256xbf16, #tpu.memory_space<vmem>>, %arg7: memref<256x256xf32, #tpu.memory_space<vmem>>) attributes {dimension_semantics = [#tpu.dimension_semantics<parallel>, #tpu.dimension_semantics<parallel>, #tpu.dimension_semantics<arbitrary>], iteration_bounds = array<i64: 2, 2, 1>, scalar_prefetch = 0 : i64, scratch_operands = 1 : i64, tpu.core_type = #tpu.core_type<tc>, window_params = [{transform_indices = @transform_0, window_bounds = array<i64: 256, 512>}, {transform_indices = @transform_1, window_bounds = array<i64: 512, 256>}, {transform_indices = @transform_2, window_bounds = array<i64: 1, 256>}, {transform_indices = @transform_3, window_bounds = array<i64: 256, 256>}]} {
    %c0_i32 = arith.constant 0 : i32
    %0 = arith.cmpi eq, %arg2, %c0_i32 : i32
    %1 = arith.extui %0 : i1 to i32
    %c0_i32_0 = arith.constant 0 : i32
    %2 = arith.cmpi ne, %1, %c0_i32_0 : i32
    scf.if %2 {
      %cst_10 = arith.constant 0.000000e+00 : f32
      %12 = vector.broadcast %cst_10 : f32 to vector<256x256xf32>
      %c0_11 = arith.constant 0 : index
      %c0_12 = arith.constant 0 : index
      %13 = vector.load %arg7[%c0_11, %c0_12] : memref<256x256xf32, #tpu.memory_space<vmem>>, vector<256x256xf32>
      tpu.vector_store %arg7[%c0_11, %c0_12], %12 {strides = array<i32>} : memref<256x256xf32, #tpu.memory_space<vmem>>, vector<256x256xf32>,
    } else {
    }
    %c0 = arith.constant 0 : index
    %c0_1 = arith.constant 0 : index
    %3 = vector.load %arg7[%c0, %c0_1] : memref<256x256xf32, #tpu.memory_space<vmem>>, vector<256x256xf32>
    %c0_2 = arith.constant 0 : index
    %c0_3 = arith.constant 0 : index
    %4 = vector.load %arg3[%c0_2, %c0_3] : memref<256x512xbf16, #tpu.memory_space<vmem>>, vector<256x512xbf16>
    %c0_4 = arith.constant 0 : index
    %c0_5 = arith.constant 0 : index
    %5 = vector.load %arg4[%c0_4, %c0_5] : memref<512x256xbf16, #tpu.memory_space<vmem>>, vector<512x256xbf16>
    %cst = arith.constant dense<0.000000e+00> : vector<256x256xf32>
    %6 = tpu.matmul %4, %5, %cst {dimension_numbers = #tpu.dot_dimension_numbers<[1], [0], [0], [1], [0, 0, 1, 1], [], []>} : vector<256x512xbf16>, vector<512x256xbf16>, vector<256x256xf32> -> vector<256x256xf32>
    %7 = arith.addf %3, %6 : vector<256x256xf32>
    %c0_6 = arith.constant 0 : index
    %c0_7 = arith.constant 0 : index
    %8 = vector.load %arg7[%c0_6, %c0_7] : memref<256x256xf32, #tpu.memory_space<vmem>>, vector<256x256xf32>
    tpu.vector_store %arg7[%c0_6, %c0_7], %7 {strides = array<i32>} : memref<256x256xf32, #tpu.memory_space<vmem>>, vector<256x256xf32>,
    %c0_i32_8 = arith.constant 0 : i32
    %9 = arith.cmpi eq, %arg2, %c0_i32_8 : i32
    %10 = arith.extui %9 : i1 to i32
    %c0_i32_9 = arith.constant 0 : i32
    %11 = arith.cmpi ne, %10, %c0_i32_9 : i32
    scf.if %11 {
      %c0_10 = arith.constant 0 : index
      %c0_11 = arith.constant 0 : index
      %12 = vector.load %arg7[%c0_10, %c0_11] : memref<256x256xf32, #tpu.memory_space<vmem>>, vector<256x256xf32>
      %c0_12 = arith.constant 0 : index
      %c0_13 = arith.constant 0 : index
      %13 = vector.load %arg5[%c0_12, %c0_13] : memref<1x256xf32, #tpu.memory_space<vmem>>, vector<1x256xf32>
      %14 = vector.broadcast %13 : vector<1x256xf32> to vector<256x256xf32>
      %15 = arith.addf %12, %14 : vector<256x256xf32>
      %16 = arith.truncf %15 : vector<256x256xf32> to vector<256x256xbf16>
      %c0_14 = arith.constant 0 : index
      %c0_15 = arith.constant 0 : index
      %17 = vector.load %arg6[%c0_14, %c0_15] : memref<256x256xbf16, #tpu.memory_space<vmem>>, vector<256x256xbf16>
      tpu.vector_store %arg6[%c0_14, %c0_15], %16 {strides = array<i32>} : memref<256x256xbf16, #tpu.memory_space<vmem>>, vector<256x256xbf16>,
    } else {
    }
    return
  }
  func.func @transform_0(%arg0: i32, %arg1: i32, %arg2: i32) -> (i32, i32) {
    %c0_i32 = arith.constant 0 : i32
    return %arg0, %arg2 : i32, i32
  }
  func.func @transform_1(%arg0: i32, %arg1: i32, %arg2: i32) -> (i32, i32) {
    %c0_i32 = arith.constant 0 : i32
    return %arg2, %arg1 : i32, i32
  }
  func.func @transform_2(%arg0: i32, %arg1: i32, %arg2: i32) -> (i32, i32) {
    %c0_i32 = arith.constant 0 : i32
    %c0_i32_0 = arith.constant 0 : i32
    return %c0_i32, %arg1 : i32, i32
  }
  func.func @transform_3(%arg0: i32, %arg1: i32, %arg2: i32) -> (i32, i32) {
    %c0_i32 = arith.constant 0 : i32
    return %arg0, %arg1 : i32, i32
  }
}

</mosaic_0001>

<llo_original>
// kernel: tpu_custom_call.1
$region0: #{tpu_custom_call.1}
  #allocation0 [shape = 'u32[]', space=smem, size = 0x4, offset = 0x4, fixed_abs, tag = 'smem constant byte address 0x4 - core index']
  #allocation1 [shape = 'u32[144,128]{1,0:T(1,128)}', space=vmem, size = 0x12000, scoped, tag = 'internal scratch']
  #allocation2 [shape = 'f32[256,256]{1,0:T(8,128)}', space=vmem, size = 0x40000, scoped, tag = 'scratch operand']
  %s0 = inlined_call_operand.hbm [shape: bf16[512,512], index: 0, kind: input, shape index: {}]
  %s1 = inlined_call_operand.hbm [shape: bf16[512,512], index: 1, kind: input, shape index: {}]
  %s2 = inlined_call_operand.hbm [shape: f32[1,512], index: 2, kind: input, shape index: {}]
  %s3 = inlined_call_operand.hbm [shape: bf16[512,512], index: 3, kind: output, shape index: {}]
  %s4 = sld [smem:[#allocation0]]
  $region65: #{tpu_custom_call.1} parent=0
    _
  %s6 = ssub.s32 1, %s4
  %s7 = scalar_select 0, %s6, %s4
  $region1: #{tpu_custom_call.1} parent=0
    #allocation3 [shape = 'u8[524288]{0}', space=vmem, size = 0x80000, scoped, tag = 'input window, operand 0']
    #allocation4 [shape = 's32[2]{0}', space=sflag, size = 0x8, scoped, tag = 'scoped memory for tpu_custom_call.1']
    #allocation5 [shape = 's32[2]{0}', space=sflag, size = 0x8, scoped, tag = 'scoped memory for tpu_custom_call.1']
    #allocation6 [shape = 'u8[524288]{0}', space=vmem, size = 0x80000, scoped, tag = 'input window, operand 1']
    #allocation7 [shape = 's32[2]{0}', space=sflag, size = 0x8, scoped, tag = 'scoped memory for tpu_custom_call.1']
    #allocation8 [shape = 'u8[2048]{0}', space=vmem, size = 0x800, scoped, tag = 'input window, operand 2']
    #allocation9 [shape = 'u8[262144]{0}', space=vmem, size = 0x40000, scoped, tag = 'output window, operand 0']
    %8 = vsyncpa [#allocation4], 0
    %s9 = scalar_lea.sflag [#allocation4], 1
    %10 = vsyncpa %s9, 0
    %11 = vsyncpa [#allocation7], 0
    %s12 = scalar_lea.sflag [#allocation7], 1
    %13 = vsyncpa %s12, 0
    %14 = vsyncpa [#allocation5], 0
    %s15 = scalar_lea.sflag [#allocation5], 1
    %16 = vsyncpa %s15, 0
    loop: start=0, step=1, limit=6
    $region2: #{tpu_custom_call.1} parent=1 // loop_pre_header
      _
    $region3: #{tpu_custom_call.1} parent=1 // loop_header
      %s18 = sphi 0, %s22
      %p19 = scmp.ge.s32.totalorder %s18, 6
      %s25 = sphi 0, %s44
      %s26 = sphi 0, %s40
      %s27 = sphi 0, %s36
      %s28 = sphi 0, %s25
      %s29 = sphi 0, %s26
      %s30 = sphi 0, %s27
      %s31 = sphi 0, %s28
      %s32 = sphi 0, %s29
      %s33 = sphi 0, %s30
      %s49 = sphi 0, %s51
      %s52 = sphi 0, %s49
      %s53 = sphi 0, %s52
      %s69 = sphi 0, %s53
      %s77 = sphi 0, %s79
      %s80 = sphi 0, %s77
      %s81 = sphi 0, %s80
      %s97 = sphi 0, %s81
      %s103 = sphi 0, %s105
      %s106 = sphi 0, %s103
      %s107 = sphi 0, %s106
      %s123 = sphi 0, %s107
      %s131 = sphi 0, %s133
      %s134 = sphi 0, %s131
      %s135 = sphi 0, %s134
      %s151 = sphi 0, %s135
    $region4: #{tpu_custom_call.1} parent=1 // loop_header_branch
      %21 = sbr.rel (%p19) target = $region8
    $region5: #{tpu_custom_call.1} parent=1 // loop_body
      %s23 = ssub.s32 %s18, 1
      %s24 = ssub.s32 %s18, 2
      %s34 = sadd.s32 1, %s27
      %p35 = scmp.ge.s32.totalorder %s34, 1
      %s36 = scalar_select %p35, 0, %s34
      %s37 = sadd.s32 1, %s26
      %s38 = scalar_select %p35, %s37, %s26
      %p39 = scmp.ge.s32.totalorder %s38, 2
      %s40 = scalar_select %p39, 0, %s38
      %s41 = sadd.s32 1, %s25
      %s42 = scalar_select %p39, %s41, %s25
      %p43 = scmp.ge.s32.totalorder %s42, 2
      %s44 = scalar_select %p43, 0, %s42
      %s45 = ssub.s32 %s25, %s44
      %s46 = ssub.s32 %s27, %s36
      %s47 = sor.u32 %s45, %s46
      %p48 = scmp.eq.s32.totalorder %s47, 0
      %s50 = sadd.s32 %s49, 1
      %s51 = scalar_select %p48, %s49, %s50
      %p54 = pneg %p48
      %p55 = scmp.eq.s32.totalorder %s18, 3
      %p56 = por %p54, %p55
      %p57 = scmp.ne.s32.totalorder %s49, %s52
      %p58 = scmp.eq.s32.totalorder %s18, 0
      %p59 = por %p57, %p58
      %p60 = scmp.ne.s32.totalorder %s49, %s52
      %p61 = scmp.eq.s32.totalorder %s23, 3
      %p62 = por %p60, %p61
      %p63 = scmp.ne.s32.totalorder %s52, %s53
      %p64 = scmp.eq.s32.totalorder %s23, 0
      %p65 = por %p63, %p64
      %p66 = scmp.ne.s32.totalorder %s52, %s53
      %p67 = scmp.eq.s32.totalorder %s24, 3
      %p68 = por %p66, %p67
      %p70 = scmp.ne.s32.totalorder %s53, %s69
      %p71 = scmp.eq.s32.totalorder %s24, 0
      %p72 = por %p70, %p71
      %s73 = ssub.s32 %s27, %s36
      %s74 = ssub.s32 %s26, %s40
      %s75 = sor.u32 %s73, %s74
      %p76 = scmp.eq.s32.totalorder %s75, 0
      %s78 = sadd.s32 %s77, 1
      %s79 = scalar_select %p76, %s77, %s78
      %p82 = pneg %p76
      %p83 = scmp.eq.s32.totalorder %s18, 3
      %p84 = por %p82, %p83
      %p85 = scmp.ne.s32.totalorder %s77, %s80
      %p86 = scmp.eq.s32.totalorder %s18, 0
      %p87 = por %p85, %p86
      %p88 = scmp.ne.s32.totalorder %s77, %s80
      %p89 = scmp.eq.s32.totalorder %s23, 3
      %p90 = por %p88, %p89
      %p91 = scmp.ne.s32.totalorder %s80, %s81
      %p92 = scmp.eq.s32.totalorder %s23, 0
      %p93 = por %p91, %p92
      %p94 = scmp.ne.s32.totalorder %s80, %s81
      %p95 = scmp.eq.s32.totalorder %s24, 3
      %p96 = por %p94, %p95
      %p98 = scmp.ne.s32.totalorder %s81, %s97
      %p99 = scmp.eq.s32.totalorder %s24, 0
      %p100 = por %p98, %p99
      %s101 = ssub.s32 %s26, %s40
      %p102 = scmp.eq.s32.totalorder %s101, 0
      %s104 = sadd.s32 %s103, 1
      %s105 = scalar_select %p102, %s103, %s104
      %p108 = pneg %p102
      %p109 = scmp.eq.s32.totalorder %s18, 3
      %p110 = por %p108, %p109
      %p111 = scmp.ne.s32.totalorder %s103, %s106
      %p112 = scmp.eq.s32.totalorder %s18, 0
      %p113 = por %p111, %p112
      %p114 = scmp.ne.s32.totalorder %s103, %s106
      %p115 = scmp.eq.s32.totalorder %s23, 3
      %p116 = por %p114, %p115
      %p117 = scmp.ne.s32.totalorder %s106, %s107
      %p118 = scmp.eq.s32.totalorder %s23, 0
      %p119 = por %p117, %p118
      %p120 = scmp.ne.s32.totalorder %s106, %s107
      %p121 = scmp.eq.s32.totalorder %s24, 3
      %p122 = por %p120, %p121
      %p124 = scmp.ne.s32.totalorder %s107, %s123
      %p125 = scmp.eq.s32.totalorder %s24, 0
      %p126 = por %p124, %p125
      %s127 = ssub.s32 %s25, %s44
      %s128 = ssub.s32 %s26, %s40
      %s129 = sor.u32 %s127, %s128
      %p130 = scmp.eq.s32.totalorder %s129, 0
      %s132 = sadd.s32 %s131, 1
      %s133 = scalar_select %p130, %s131, %s132
      %p136 = pneg %p130
      %p137 = scmp.eq.s32.totalorder %s18, 3
      %p138 = por %p136, %p137
      %p139 = scmp.ne.s32.totalorder %s131, %s134
      %p140 = scmp.eq.s32.totalorder %s18, 0
      %p141 = por %p139, %p140
      %p142 = scmp.ne.s32.totalorder %s131, %s134
      %p143 = scmp.eq.s32.totalorder %s23, 3
      %p144 = por %p142, %p143
      %p145 = scmp.ne.s32.totalorder %s134, %s135
      %p146 = scmp.eq.s32.totalorder %s23, 0
      %p147 = por %p145, %p146
      %p148 = scmp.ne.s32.totalorder %s134, %s135
      %p149 = scmp.eq.s32.totalorder %s24, 3
      %p150 = por %p148, %p149
      %p152 = scmp.ne.s32.totalorder %s135, %s151
      %p153 = scmp.eq.s32.totalorder %s24, 0
      %p154 = por %p152, %p153
      %p155 = scmp.le.s32.totalorder 1, %s18
      %p156 = scmp.lt.s32.totalorder %s18, 5
      %p157 = pnand %p155, %p156
      %p158 = pneg %p157
      // Predicated region
      $region9: #{tpu_custom_call.1} parent=5 // pred_check
        _
      $region10: #{tpu_custom_call.1} parent=5 // pred_check_branch
        %160 = sbr.rel (%p157) target = $region12
      $region11: #{tpu_custom_call.1} parent=5 // pred_region
        %s161 = ssub.s32 %s18, 1
      $region12: #{tpu_custom_call.1} parent=5 // pred_fallthru
        _
      %p162 = scmp.lt.s32.totalorder %s18, 4
      // Predicated region
      $region13: #{tpu_custom_call.1} parent=5 // pred_check
        %p163 = pneg %p162
      $region14: #{tpu_custom_call.1} parent=5 // pred_check_branch
        %165 = sbr.rel (%p163) target = $region16
      $region15: #{tpu_custom_call.1} parent=5 // pred_region
        // Predicated region
        $region17: #{tpu_custom_call.1} parent=15 // pred_check
          %p166 = pneg %p59
        $region18: #{tpu_custom_call.1} parent=15 // pred_check_branch
          %168 = sbr.rel (%p166) target = $region20
        $region19: #{tpu_custom_call.1} parent=15 // pred_region
          %s169 = sand.u32 %s49, 1
          %s170 = scalar_lea.sflag [#allocation4], %s169
          %s171 = sand.u32 %s49, 1
          %s172 = smul.addr %s171, 512
          %s173 = scalar_lea.vmem [#allocation3], %s172
          %s174 = smul.u32 32, %s25
          %s175 = smul.u32 4, %s27
          %s177 = ssub.s32 8192, 8192
          %178 = vsyncadd %s170, %s177
          %s179 = smul.addr %s174, 4
          %s180 = sadd.s32 %s175, %s179
          %s181 = smul.addr %s180, 64
          %s182 = scalar_lea.hbm %s0, %s181
          %s183 = sshll.u32 %s173, 4
          %s184 = int_to_ptr.vmem [resolvable:$true] %s183
          %189 = dma.hbm_to_vmem [thread:$0]  %s182, 8192, %s184, %s170, 256, 256, 16
        $region20: #{tpu_custom_call.1} parent=15 // pred_fallthru
          _
        // Predicated region
        $region21: #{tpu_custom_call.1} parent=15 // pred_check
          %p190 = pneg %p87
        $region22: #{tpu_custom_call.1} parent=15 // pred_check_branch
          %192 = sbr.rel (%p190) target = $region24
        $region23: #{tpu_custom_call.1} parent=15 // pred_region
          %s193 = sand.u32 %s18, 1
          %s194 = scalar_lea.sflag [#allocation7], %s193
          %s195 = sand.u32 %s77, 1
          %s196 = smul.addr %s195, 512
          %s197 = scalar_lea.vmem [#allocation6], %s196
          %s198 = smul.u32 64, %s27
          %s199 = smul.u32 2, %s26
          %s201 = ssub.s32 8192, 8192
          %202 = vsyncadd %s194, %s201
          %s203 = smul.addr %s198, 4
          %s204 = sadd.s32 %s199, %s203
          %s205 = smul.addr %s204, 64
          %s206 = scalar_lea.hbm %s1, %s205
          %s207 = sshll.u32 %s197, 4
          %s208 = int_to_ptr.vmem [resolvable:$true] %s207
          %213 = dma.hbm_to_vmem [thread:$0]  %s206, 8192, %s208, %s194, 256, 128, 8
        $region24: #{tpu_custom_call.1} parent=15 // pred_fallthru
          _
        // Predicated region
        $region25: #{tpu_custom_call.1} parent=15 // pred_check
          %p214 = pneg %p113
        $region26: #{tpu_custom_call.1} parent=15 // pred_check_branch
          %216 = sbr.rel (%p214) target = $region28
        $region27: #{tpu_custom_call.1} parent=15 // pred_region
          %s217 = sand.u32 %s18, 1
          %s218 = scalar_lea.sflag [#allocation7], %s217
          %s219 = sand.u32 %s103, 1
          %s220 = smul.addr %s219, 2
          %s221 = scalar_lea.vmem [#allocation8], %s220
          %s222 = smul.u32 2, %s26
          %s224 = ssub.s32 32, 32
          %225 = vsyncadd %s218, %s224
          %s226 = smul.addr %s222, 16
          %s227 = scalar_lea.hbm %s2, %s226
          %s229 = sshll.u32 %s221, 4
          %s230 = int_to_ptr.vmem [resolvable:$true] %s229
          %232 = dma.hbm_to_vmem [thread:$0]  %s227, 32, %s230, %s218
        $region28: #{tpu_custom_call.1} parent=15 // pred_fallthru
          _
      $region16: #{tpu_custom_call.1} parent=5 // pred_fallthru
        _
      %p233 = scmp.le.s32.totalorder 1, %s18
      %p234 = scmp.lt.s32.totalorder %s18, 5
      %p235 = pnand %p233, %p234
      %p236 = pneg %p235
      // Predicated region
      $region29: #{tpu_custom_call.1} parent=5 // pred_check
        _
      $region30: #{tpu_custom_call.1} parent=5 // pred_check_branch
        %238 = sbr.rel (%p235) target = $region32
      $region31: #{tpu_custom_call.1} parent=5 // pred_region
        %s239 = ssub.s32 %s18, 1
        %s240 = sand.u32 %s52, 1
        %s241 = scalar_lea.sflag [#allocation4], %s240
        %s242 = sand.u32 %s52, 1
        %s243 = smul.addr %s242, 512
        %s244 = scalar_lea.vmem [#allocation3], %s243
        // Predicated region
        $region33: #{tpu_custom_call.1} parent=31 // pred_check
          %p245 = pneg %p65
        $region34: #{tpu_custom_call.1} parent=31 // pred_check_branch
          %247 = sbr.rel (%p245) target = $region36
        $region35: #{tpu_custom_call.1} parent=31 // pred_region
          %248 = dma.done %s241, 8192
        $region36: #{tpu_custom_call.1} parent=31 // pred_fallthru
          _
        %s249 = sand.u32 %s23, 1
        %s250 = scalar_lea.sflag [#allocation7], %s249
        %s251 = sand.u32 %s80, 1
        %s252 = smul.addr %s251, 512
        %s253 = scalar_lea.vmem [#allocation6], %s252
        // Predicated region
        $region37: #{tpu_custom_call.1} parent=31 // pred_check
          %p254 = pneg %p93
        $region38: #{tpu_custom_call.1} parent=31 // pred_check_branch
          %256 = sbr.rel (%p254) target = $region40
        $region39: #{tpu_custom_call.1} parent=31 // pred_region
          %257 = dma.done %s250, 8192
        $region40: #{tpu_custom_call.1} parent=31 // pred_fallthru
          _
        %s258 = sand.u32 %s23, 1
        %s259 = scalar_lea.sflag [#allocation7], %s258
        %s260 = sand.u32 %s106, 1
        %s261 = smul.addr %s260, 2
        %s262 = scalar_lea.vmem [#allocation8], %s261
        // Predicated region
        $region41: #{tpu_custom_call.1} parent=31 // pred_check
          %p263 = pneg %p119
        $region42: #{tpu_custom_call.1} parent=31 // pred_check_branch
          %265 = sbr.rel (%p263) target = $region44
        $region43: #{tpu_custom_call.1} parent=31 // pred_region
          %266 = dma.done %s259, 32
        $region44: #{tpu_custom_call.1} parent=31 // pred_fallthru
          _
        %s267 = sand.u32 %s52, 1
        %s268 = scalar_lea.sflag [#allocation4], %s267
        %s269 = sand.u32 %s52, 1
        %s270 = smul.addr %s269, 512
        %s271 = scalar_lea.vmem [#allocation3], %s270
        %p272 = pneg %p65
        %p273 = pneg %p62
        %s274 = sand.u32 %s23, 1
        %s275 = scalar_lea.sflag [#allocation7], %s274
        %s276 = sand.u32 %s80, 1
        %s277 = smul.addr %s276, 512
        %s278 = scalar_lea.vmem [#allocation6], %s277
        %p279 = pneg %p93
        %p280 = pneg %p90
        %s281 = sand.u32 %s23, 1
        %s282 = scalar_lea.sflag [#allocation7], %s281
        %s283 = sand.u32 %s106, 1
        %s284 = smul.addr %s283, 2
        %s285 = scalar_lea.vmem [#allocation8], %s284
        %p286 = pneg %p119
        %p287 = pneg %p116
        %p288 = pneg %p147
        %p289 = pneg %p144
        %s290 = sand.u32 %s134, 1
        %s291 = scalar_lea.sflag [#allocation5], %s290
        %s292 = sand.u32 %s134, 1
        %s293 = smul.addr %s292, 256
        %s294 = scalar_lea.vmem [#allocation9], %s293
        %s295 = smul.u32 32, %s28
        %s296 = smul.u32 4, %s30
        %s297 = smul.u32 64, %s30
        %s298 = smul.u32 2, %s29
        %s299 = smul.u32 2, %s29
        %s300 = smul.u32 32, %s28
        %s301 = smul.u32 2, %s29
        %p302 = scmp.eq.s32.totalorder %s30, 0
        // Predicated region
        $region45: #{tpu_custom_call.1} parent=31 // pred_check
          %p303 = pneg %p302
        $region46: #{tpu_custom_call.1} parent=31 // pred_check_branch
          %305 = sbr.rel (%p303) target = $region48
        $region47: #{tpu_custom_call.1} parent=31 // pred_region
          %306 = vst [vmem:[#allocation2] sm:$0xff] 0.0
          %307 = vst [vmem:[#allocation2 + $0x8] sm:$0xff] 0.0
          %308 = vst [vmem:[#allocation2 + $0x10] sm:$0xff] 0.0
          %309 = vst [vmem:[#allocation2 + $0x18] sm:$0xff] 0.0
          %310 = vst [vmem:[#allocation2 + $0x20] sm:$0xff] 0.0
          %311 = vst [vmem:[#allocation2 + $0x28] sm:$0xff] 0.0
          %312 = vst [vmem:[#allocation2 + $0x30] sm:$0xff] 0.0
          %313 = vst [vmem:[#allocation2 + $0x38] sm:$0xff] 0.0
          %314 = vst [vmem:[#allocation2 + $0x40] sm:$0xff] 0.0
          %315 = vst [vmem:[#allocation2 + $0x48] sm:$0xff] 0.0
          %316 = vst [vmem:[#allocation2 + $0x50] sm:$0xff] 0.0
          %317 = vst [vmem:[#allocation2 + $0x58] sm:$0xff] 0.0
          %318 = vst [vmem:[#allocation2 + $0x60] sm:$0xff] 0.0
          %319 = vst [vmem:[#allocation2 + $0x68] sm:$0xff] 0.0
          %320 = vst [vmem:[#allocation2 + $0x70] sm:$0xff] 0.0
          %321 = vst [vmem:[#allocation2 + $0x78] sm:$0xff] 0.0
          %322 = vst [vmem:[#allocation2 + $0x80] sm:$0xff] 0.0
          %323 = vst [vmem:[#allocation2 + $0x88] sm:$0xff] 0.0
          %324 = vst [vmem:[#allocation2 + $0x90] sm:$0xff] 0.0
          %325 = vst [vmem:[#allocation2 + $0x98] sm:$0xff] 0.0
          %326 = vst [vmem:[#allocation2 + $0xa0] sm:$0xff] 0.0
          %327 = vst [vmem:[#allocation2 + $0xa8] sm:$0xff] 0.0
          %328 = vst [vmem:[#allocation2 + $0xb0] sm:$0xff] 0.0
          %329 = vst [vmem:[#allocation2 + $0xb8] sm:$0xff] 0.0
          %330 = vst [vmem:[#allocation2 + $0xc0] sm:$0xff] 0.0
          %331 = vst [vmem:[#allocation2 + $0xc8] sm:$0xff] 0.0
          %332 = vst [vmem:[#allocation2 + $0xd0] sm:$0xff] 0.0
          %333 = vst [vmem:[#allocation2 + $0xd8] sm:$0xff] 0.0
          %334 = vst [vmem:[#allocation2 + $0xe0] sm:$0xff] 0.0
          %335 = vst [vmem:[#allocation2 + $0xe8] sm:$0xff] 0.0
          %336 = vst [vmem:[#allocation2 + $0xf0] sm:$0xff] 0.0
          %337 = vst [vmem:[#allocation2 + $0xf8] sm:$0xff] 0.0
          %338 = vst [vmem:[#allocation2 + $0x100] sm:$0xff] 0.0
          %339 = vst [vmem:[#allocation2 + $0x108] sm:$0xff] 0.0
          %340 = vst [vmem:[#allocation2 + $0x110] sm:$0xff] 0.0
          %341 = vst [vmem:[#allocation2 + $0x118] sm:$0xff] 0.0
          %342 = vst [vmem:[#allocation2 + $0x120] sm:$0xff] 0.0
          %343 = vst [vmem:[#allocation2 + $0x128] sm:$0xff] 0.0
          %344 = vst [vmem:[#allocation2 + $0x130] sm:$0xff] 0.0
          %345 = vst [vmem:[#allocation2 + $0x138] sm:$0xff] 0.0
          %346 = vst [vmem:[#allocation2 + $0x140] sm:$0xff] 0.0
          %347 = vst [vmem:[#allocation2 + $0x148] sm:$0xff] 0.0
          %348 = vst [vmem:[#allocation2 + $0x150] sm:$0xff] 0.0
          %349 = vst [vmem:[#allocation2 + $0x158] sm:$0xff] 0.0
          %350 = vst [vmem:[#allocation2 + $0x160] sm:$0xff] 0.0
          %351 = vst [vmem:[#allocation2 + $0x168] sm:$0xff] 0.0
          %352 = vst [vmem:[#allocation2 + $0x170] sm:$0xff] 0.0
          %353 = vst [vmem:[#allocation2 + $0x178] sm:$0xff] 0.0
          %354 = vst [vmem:[#allocation2 + $0x180] sm:$0xff] 0.0
          %355 = vst [vmem:[#allocation2 + $0x188] sm:$0xff] 0.0
          %356 = vst [vmem:[#allocation2 + $0x190] sm:$0xff] 0.0
          %357 = vst [vmem:[#allocation2 + $0x198] sm:$0xff] 0.0
          %358 = vst [vmem:[#allocation2 + $0x1a0] sm:$0xff] 0.0
          %359 = vst [vmem:[#allocation2 + $0x1a8] sm:$0xff] 0.0
          %360 = vst [vmem:[#allocation2 + $0x1b0] sm:$0xff] 0.0
          %361 = vst [vmem:[#allocation2 + $0x1b8] sm:$0xff] 0.0
          %362 = vst [vmem:[#allocation2 + $0x1c0] sm:$0xff] 0.0
          %363 = vst [vmem:[#allocation2 + $0x1c8] sm:$0xff] 0.0
          %364 = vst [vmem:[#allocation2 + $0x1d0] sm:$0xff] 0.0
          %365 = vst [vmem:[#allocation2 + $0x1d8] sm:$0xff] 0.0
          %366 = vst [vmem:[#allocation2 + $0x1e0] sm:$0xff] 0.0
          %367 = vst [vmem:[#allocation2 + $0x1e8] sm:$0xff] 0.0
          %368 = vst [vmem:[#allocation2 + $0x1f0] sm:$0xff] 0.0
          %369 = vst [vmem:[#allocation2 + $0x1f8] sm:$0xff] 0.0
        $region48: #{tpu_custom_call.1} parent=31 // pred_fallthru
          _
        %v370 = vld [vmem:[#allocation2] sm:$0xff]
        %v371 = vld [vmem:[#allocation2 + $0x8] sm:$0xff]
        %v372 = vld [vmem:[#allocation2 + $0x10] sm:$0xff]
        %v373 = vld [vmem:[#allocation2 + $0x18] sm:$0xff]
        %v374 = vld [vmem:[#allocation2 + $0x20] sm:$0xff]
        %v375 = vld [vmem:[#allocation2 + $0x28] sm:$0xff]
        %v376 = vld [vmem:[#allocation2 + $0x30] sm:$0xff]
        %v377 = vld [vmem:[#allocation2 + $0x38] sm:$0xff]
        %v378 = vld [vmem:[#allocation2 + $0x40] sm:$0xff]
        %v379 = vld [vmem:[#allocation2 + $0x48] sm:$0xff]
        %v380 = vld [vmem:[#allocation2 + $0x50] sm:$0xff]
        %v381 = vld [vmem:[#allocation2 + $0x58] sm:$0xff]
        %v382 = vld [vmem:[#allocation2 + $0x60] sm:$0xff]
        %v383 = vld [vmem:[#allocation2 + $0x68] sm:$0xff]
        %v384 = vld [vmem:[#allocation2 + $0x70] sm:$0xff]
        %v385 = vld [vmem:[#allocation2 + $0x78] sm:$0xff]
        %v386 = vld [vmem:[#allocation2 + $0x80] sm:$0xff]
        %v387 = vld [vmem:[#allocation2 + $0x88] sm:$0xff]
        %v388 = vld [vmem:[#allocation2 + $0x90] sm:$0xff]
        %v389 = vld [vmem:[#allocation2 + $0x98] sm:$0xff]
        %v390 = vld [vmem:[#allocation2 + $0xa0] sm:$0xff]
        %v391 = vld [vmem:[#allocation2 + $0xa8] sm:$0xff]
        %v392 = vld [vmem:[#allocation2 + $0xb0] sm:$0xff]
        %v393 = vld [vmem:[#allocation2 + $0xb8] sm:$0xff]
        %v394 = vld [vmem:[#allocation2 + $0xc0] sm:$0xff]
        %v395 = vld [vmem:[#allocation2 + $0xc8] sm:$0xff]
        %v396 = vld [vmem:[#allocation2 + $0xd0] sm:$0xff]
        %v397 = vld [vmem:[#allocation2 + $0xd8] sm:$0xff]
        %v398 = vld [vmem:[#allocation2 + $0xe0] sm:$0xff]
        %v399 = vld [vmem:[#allocation2 + $0xe8] sm:$0xff]
        %v400 = vld [vmem:[#allocation2 + $0xf0] sm:$0xff]
        %v401 = vld [vmem:[#allocation2 + $0xf8] sm:$0xff]
        %v402 = vld [vmem:[#allocation2 + $0x100] sm:$0xff]
        %v403 = vld [vmem:[#allocation2 + $0x108] sm:$0xff]
        %v404 = vld [vmem:[#allocation2 + $0x110] sm:$0xff]
        %v405 = vld [vmem:[#allocation2 + $0x118] sm:$0xff]
        %v406 = vld [vmem:[#allocation2 + $0x120] sm:$0xff]
        %v407 = vld [vmem:[#allocation2 + $0x128] sm:$0xff]
        %v408 = vld [vmem:[#allocation2 + $0x130] sm:$0xff]
        %v409 = vld [vmem:[#allocation2 + $0x138] sm:$0xff]
        %v410 = vld [vmem:[#allocation2 + $0x140] sm:$0xff]
        %v411 = vld [vmem:[#allocation2 + $0x148] sm:$0xff]
        %v412 = vld [vmem:[#allocation2 + $0x150] sm:$0xff]
        %v413 = vld [vmem:[#allocation2 + $0x158] sm:$0xff]
        %v414 = vld [vmem:[#allocation2 + $0x160] sm:$0xff]
        %v415 = vld [vmem:[#allocation2 + $0x168] sm:$0xff]
        %v416 = vld [vmem:[#allocation2 + $0x170] sm:$0xff]
        %v417 = vld [vmem:[#allocation2 + $0x178] sm:$0xff]
        %v418 = vld [vmem:[#allocation2 + $0x180] sm:$0xff]
        %v419 = vld [vmem:[#allocation2 + $0x188] sm:$0xff]
        %v420 = vld [vmem:[#allocation2 + $0x190] sm:$0xff]
        %v421 = vld [vmem:[#allocation2 + $0x198] sm:$0xff]
        %v422 = vld [vmem:[#allocation2 + $0x1a0] sm:$0xff]
        %v423 = vld [vmem:[#allocation2 + $0x1a8] sm:$0xff]
        %v424 = vld [vmem:[#allocation2 + $0x1b0] sm:$0xff]
        %v425 = vld [vmem:[#allocation2 + $0x1b8] sm:$0xff]
        %v426 = vld [vmem:[#allocation2 + $0x1c0] sm:$0xff]
        %v427 = vld [vmem:[#allocation2 + $0x1c8] sm:$0xff]
        %v428 = vld [vmem:[#allocation2 + $0x1d0] sm:$0xff]
        %v429 = vld [vmem:[#allocation2 + $0x1d8] sm:$0xff]
        %v430 = vld [vmem:[#allocation2 + $0x1e0] sm:$0xff]
        %v431 = vld [vmem:[#allocation2 + $0x1e8] sm:$0xff]
        %v432 = vld [vmem:[#allocation2 + $0x1f0] sm:$0xff]
        %v433 = vld [vmem:[#allocation2 + $0x1f8] sm:$0xff]
        %v434 = vld [vmem:[%s244] sm:$0xff]
        %v435 = vld [vmem:[%s244 + $0x8] sm:$0xff]
        %v436 = vld [vmem:[%s244 + $0x10] sm:$0xff]
        %v437 = vld [vmem:[%s244 + $0x18] sm:$0xff]
        %v438 = vld [vmem:[%s244 + $0x20] sm:$0xff]
        %v439 = vld [vmem:[%s244 + $0x28] sm:$0xff]
        %v440 = vld [vmem:[%s244 + $0x30] sm:$0xff]
        %v441 = vld [vmem:[%s244 + $0x38] sm:$0xff]
        %v442 = vld [vmem:[%s244 + $0x40] sm:$0xff]
        %v443 = vld [vmem:[%s244 + $0x48] sm:$0xff]
        %v444 = vld [vmem:[%s244 + $0x50] sm:$0xff]
        %v445 = vld [vmem:[%s244 + $0x58] sm:$0xff]
        %v446 = vld [vmem:[%s244 + $0x60] sm:$0xff]
        %v447 = vld [vmem:[%s244 + $0x68] sm:$0xff]
        %v448 = vld [vmem:[%s244 + $0x70] sm:$0xff]
        %v449 = vld [vmem:[%s244 + $0x78] sm:$0xff]
        %v450 = vld [vmem:[%s244 + $0x80] sm:$0xff]
        %v451 = vld [vmem:[%s244 + $0x88] sm:$0xff]
        %v452 = vld [vmem:[%s244 + $0x90] sm:$0xff]
        %v453 = vld [vmem:[%s244 + $0x98] sm:$0xff]
        %v454 = vld [vmem:[%s244 + $0xa0] sm:$0xff]
        %v455 = vld [vmem:[%s244 + $0xa8] sm:$0xff]
        %v456 = vld [vmem:[%s244 + $0xb0] sm:$0xff]
        %v457 = vld [vmem:[%s244 + $0xb8] sm:$0xff]
        %v458 = vld [vmem:[%s244 + $0xc0] sm:$0xff]
        %v459 = vld [vmem:[%s244 + $0xc8] sm:$0xff]
        %v460 = vld [vmem:[%s244 + $0xd0] sm:$0xff]
        %v461 = vld [vmem:[%s244 + $0xd8] sm:$0xff]
        %v462 = vld [vmem:[%s244 + $0xe0] sm:$0xff]
        %v463 = vld [vmem:[%s244 + $0xe8] sm:$0xff]
        %v464 = vld [vmem:[%s244 + $0xf0] sm:$0xff]
        %v465 = vld [vmem:[%s244 + $0xf8] sm:$0xff]
        %v466 = vld [vmem:[%s244 + $0x100] sm:$0xff]
        %v467 = vld [vmem:[%s244 + $0x108] sm:$0xff]
        %v468 = vld [vmem:[%s244 + $0x110] sm:$0xff]
        %v469 = vld [vmem:[%s244 + $0x118] sm:$0xff]
        %v470 = vld [vmem:[%s244 + $0x120] sm:$0xff]
        %v471 = vld [vmem:[%s244 + $0x128] sm:$0xff]
        %v472 = vld [vmem:[%s244 + $0x130] sm:$0xff]
        %v473 = vld [vmem:[%s244 + $0x138] sm:$0xff]
        %v474 = vld [vmem:[%s244 + $0x140] sm:$0xff]
        %v475 = vld [vmem:[%s244 + $0x148] sm:$0xff]
        %v476 = vld [vmem:[%s244 + $0x150] sm:$0xff]
        %v477 = vld [vmem:[%s244 + $0x158] sm:$0xff]
        %v478 = vld [vmem:[%s244 + $0x160] sm:$0xff]
        %v479 = vld [vmem:[%s244 + $0x168] sm:$0xff]
        %v480 = vld [vmem:[%s244 + $0x170] sm:$0xff]
        %v481 = vld [vmem:[%s244 + $0x178] sm:$0xff]
        %v482 = vld [vmem:[%s244 + $0x180] sm:$0xff]
        %v483 = vld [vmem:[%s244 + $0x188] sm:$0xff]
        %v484 = vld [vmem:[%s244 + $0x190] sm:$0xff]
        %v485 = vld [vmem:[%s244 + $0x198] sm:$0xff]
        %v486 = vld [vmem:[%s244 + $0x1a0] sm:$0xff]
        %v487 = vld [vmem:[%s244 + $0x1a8] sm:$0xff]
        %v488 = vld [vmem:[%s244 + $0x1b0] sm:$0xff]
        %v489 = vld [vmem:[%s244 + $0x1b8] sm:$0xff]
        %v490 = vld [vmem:[%s244 + $0x1c0] sm:$0xff]
        %v491 = vld [vmem:[%s244 + $0x1c8] sm:$0xff]
        %v492 = vld [vmem:[%s244 + $0x1d0] sm:$0xff]
        %v493 = vld [vmem:[%s244 + $0x1d8] sm:$0xff]
        %v494 = vld [vmem:[%s244 + $0x1e0] sm:$0xff]
        %v495 = vld [vmem:[%s244 + $0x1e8] sm:$0xff]
        %v496 = vld [vmem:[%s244 + $0x1f0] sm:$0xff]
        %v497 = vld [vmem:[%s244 + $0x1f8] sm:$0xff]
        %v498 = vld [vmem:[%s253] sm:$0xff]
        %v499 = vld [vmem:[%s253 + $0x8] sm:$0xff]
        %v500 = vld [vmem:[%s253 + $0x10] sm:$0xff]
        %v501 = vld [vmem:[%s253 + $0x18] sm:$0xff]
        %v502 = vld [vmem:[%s253 + $0x20] sm:$0xff]
        %v503 = vld [vmem:[%s253 + $0x28] sm:$0xff]
        %v504 = vld [vmem:[%s253 + $0x30] sm:$0xff]
        %v505 = vld [vmem:[%s253 + $0x38] sm:$0xff]
        %v506 = vld [vmem:[%s253 + $0x40] sm:$0xff]
        %v507 = vld [vmem:[%s253 + $0x48] sm:$0xff]
        %v508 = vld [vmem:[%s253 + $0x50] sm:$0xff]
        %v509 = vld [vmem:[%s253 + $0x58] sm:$0xff]
        %v510 = vld [vmem:[%s253 + $0x60] sm:$0xff]
        %v511 = vld [vmem:[%s253 + $0x68] sm:$0xff]
        %v512 = vld [vmem:[%s253 + $0x70] sm:$0xff]
        %v513 = vld [vmem:[%s253 + $0x78] sm:$0xff]
        %v514 = vld [vmem:[%s253 + $0x80] sm:$0xff]
        %v515 = vld [vmem:[%s253 + $0x88] sm:$0xff]
        %v516 = vld [vmem:[%s253 + $0x90] sm:$0xff]
        %v517 = vld [vmem:[%s253 + $0x98] sm:$0xff]
        %v518 = vld [vmem:[%s253 + $0xa0] sm:$0xff]
        %v519 = vld [vmem:[%s253 + $0xa8] sm:$0xff]
        %v520 = vld [vmem:[%s253 + $0xb0] sm:$0xff]
        %v521 = vld [vmem:[%s253 + $0xb8] sm:$0xff]
        %v522 = vld [vmem:[%s253 + $0xc0] sm:$0xff]
        %v523 = vld [vmem:[%s253 + $0xc8] sm:$0xff]
        %v524 = vld [vmem:[%s253 + $0xd0] sm:$0xff]
        %v525 = vld [vmem:[%s253 + $0xd8] sm:$0xff]
        %v526 = vld [vmem:[%s253 + $0xe0] sm:$0xff]
        %v527 = vld [vmem:[%s253 + $0xe8] sm:$0xff]
        %v528 = vld [vmem:[%s253 + $0xf0] sm:$0xff]
        %v529 = vld [vmem:[%s253 + $0xf8] sm:$0xff]
        %v530 = vld [vmem:[%s253 + $0x100] sm:$0xff]
        %v531 = vld [vmem:[%s253 + $0x108] sm:$0xff]
        %v532 = vld [vmem:[%s253 + $0x110] sm:$0xff]
        %v533 = vld [vmem:[%s253 + $0x118] sm:$0xff]
        %v534 = vld [vmem:[%s253 + $0x120] sm:$0xff]
        %v535 = vld [vmem:[%s253 + $0x128] sm:$0xff]
        %v536 = vld [vmem:[%s253 + $0x130] sm:$0xff]
        %v537 = vld [vmem:[%s253 + $0x138] sm:$0xff]
        %v538 = vld [vmem:[%s253 + $0x140] sm:$0xff]
        %v539 = vld [vmem:[%s253 + $0x148] sm:$0xff]
        %v540 = vld [vmem:[%s253 + $0x150] sm:$0xff]
        %v541 = vld [vmem:[%s253 + $0x158] sm:$0xff]
        %v542 = vld [vmem:[%s253 + $0x160] sm:$0xff]
        %v543 = vld [vmem:[%s253 + $0x168] sm:$0xff]
        %v544 = vld [vmem:[%s253 + $0x170] sm:$0xff]
        %v545 = vld [vmem:[%s253 + $0x178] sm:$0xff]
        %v546 = vld [vmem:[%s253 + $0x180] sm:$0xff]
        %v547 = vld [vmem:[%s253 + $0x188] sm:$0xff]
        %v548 = vld [vmem:[%s253 + $0x190] sm:$0xff]
        %v549 = vld [vmem:[%s253 + $0x198] sm:$0xff]
        %v550 = vld [vmem:[%s253 + $0x1a0] sm:$0xff]
        %v551 = vld [vmem:[%s253 + $0x1a8] sm:$0xff]
        %v552 = vld [vmem:[%s253 + $0x1b0] sm:$0xff]
        %v553 = vld [vmem:[%s253 + $0x1b8] sm:$0xff]
        %v554 = vld [vmem:[%s253 + $0x1c0] sm:$0xff]
        %v555 = vld [vmem:[%s253 + $0x1c8] sm:$0xff]
        %v556 = vld [vmem:[%s253 + $0x1d0] sm:$0xff]
        %v557 = vld [vmem:[%s253 + $0x1d8] sm:$0xff]
        %v558 = vld [vmem:[%s253 + $0x1e0] sm:$0xff]
        %v559 = vld [vmem:[%s253 + $0x1e8] sm:$0xff]
        %v560 = vld [vmem:[%s253 + $0x1f0] sm:$0xff]
        %v561 = vld [vmem:[%s253 + $0x1f8] sm:$0xff]
        %v626 = vunpack.c.l.b16 %v434
        %v627 = vunpack.c.h.b16 %v434
        %v628 = vunpack.c.l.b16 %v435
        %v629 = vunpack.c.h.b16 %v435
        %v630 = vunpack.c.l.b16 %v436
        %v631 = vunpack.c.h.b16 %v436
        %v632 = vunpack.c.l.b16 %v437
        %v633 = vunpack.c.h.b16 %v437
        %v634 = vunpack.c.l.b16 %v438
        %v635 = vunpack.c.h.b16 %v438
        %v636 = vunpack.c.l.b16 %v439
        %v637 = vunpack.c.h.b16 %v439
        %v638 = vunpack.c.l.b16 %v440
        %v639 = vunpack.c.h.b16 %v440
        %v640 = vunpack.c.l.b16 %v441
        %v641 = vunpack.c.h.b16 %v441
        %v642 = vunpack.c.l.b16 %v442
        %v643 = vunpack.c.h.b16 %v442
        %v644 = vunpack.c.l.b16 %v443
        %v645 = vunpack.c.h.b16 %v443
        %v646 = vunpack.c.l.b16 %v444
        %v647 = vunpack.c.h.b16 %v444
        %v648 = vunpack.c.l.b16 %v445
        %v649 = vunpack.c.h.b16 %v445
        %v650 = vunpack.c.l.b16 %v446
        %v651 = vunpack.c.h.b16 %v446
        %v652 = vunpack.c.l.b16 %v447
        %v653 = vunpack.c.h.b16 %v447
        %v654 = vunpack.c.l.b16 %v448
        %v655 = vunpack.c.h.b16 %v448
        %v656 = vunpack.c.l.b16 %v449
        %v657 = vunpack.c.h.b16 %v449
        %v658 = vunpack.c.l.b16 %v450
        %v659 = vunpack.c.h.b16 %v450
        %v660 = vunpack.c.l.b16 %v451
        %v661 = vunpack.c.h.b16 %v451
        %v662 = vunpack.c.l.b16 %v452
        %v663 = vunpack.c.h.b16 %v452
        %v664 = vunpack.c.l.b16 %v453
        %v665 = vunpack.c.h.b16 %v453
        %v666 = vunpack.c.l.b16 %v454
        %v667 = vunpack.c.h.b16 %v454
        %v668 = vunpack.c.l.b16 %v455
        %v669 = vunpack.c.h.b16 %v455
        %v670 = vunpack.c.l.b16 %v456
        %v671 = vunpack.c.h.b16 %v456
        %v672 = vunpack.c.l.b16 %v457
        %v673 = vunpack.c.h.b16 %v457
        %v674 = vunpack.c.l.b16 %v458
        %v675 = vunpack.c.h.b16 %v458
        %v676 = vunpack.c.l.b16 %v459
        %v677 = vunpack.c.h.b16 %v459
        %v678 = vunpack.c.l.b16 %v460
        %v679 = vunpack.c.h.b16 %v460
        %v680 = vunpack.c.l.b16 %v461
        %v681 = vunpack.c.h.b16 %v461
        %v682 = vunpack.c.l.b16 %v462
        %v683 = vunpack.c.h.b16 %v462
        %v684 = vunpack.c.l.b16 %v463
        %v685 = vunpack.c.h.b16 %v463
        %v686 = vunpack.c.l.b16 %v464
        %v687 = vunpack.c.h.b16 %v464
        %v688 = vunpack.c.l.b16 %v465
        %v689 = vunpack.c.h.b16 %v465
        %v690 = vunpack.c.l.b16 %v466
        %v691 = vunpack.c.h.b16 %v466
        %v692 = vunpack.c.l.b16 %v467
        %v693 = vunpack.c.h.b16 %v467
        %v694 = vunpack.c.l.b16 %v468
        %v695 = vunpack.c.h.b16 %v468
        %v696 = vunpack.c.l.b16 %v469
        %v697 = vunpack.c.h.b16 %v469
        %v698 = vunpack.c.l.b16 %v470
        %v699 = vunpack.c.h.b16 %v470
        %v700 = vunpack.c.l.b16 %v471
        %v701 = vunpack.c.h.b16 %v471
        %v702 = vunpack.c.l.b16 %v472
        %v703 = vunpack.c.h.b16 %v472
        %v704 = vunpack.c.l.b16 %v473
        %v705 = vunpack.c.h.b16 %v473
        %v706 = vunpack.c.l.b16 %v474
        %v707 = vunpack.c.h.b16 %v474
        %v708 = vunpack.c.l.b16 %v475
        %v709 = vunpack.c.h.b16 %v475
        %v710 = vunpack.c.l.b16 %v476
        %v711 = vunpack.c.h.b16 %v476
        %v712 = vunpack.c.l.b16 %v477
        %v713 = vunpack.c.h.b16 %v477
        %v714 = vunpack.c.l.b16 %v478
        %v715 = vunpack.c.h.b16 %v478
        %v716 = vunpack.c.l.b16 %v479
        %v717 = vunpack.c.h.b16 %v479
        %v718 = vunpack.c.l.b16 %v480
        %v719 = vunpack.c.h.b16 %v480
        %v720 = vunpack.c.l.b16 %v481
        %v721 = vunpack.c.h.b16 %v481
        %v722 = vunpack.c.l.b16 %v482
        %v723 = vunpack.c.h.b16 %v482
        %v724 = vunpack.c.l.b16 %v483
        %v725 = vunpack.c.h.b16 %v483
        %v726 = vunpack.c.l.b16 %v484
        %v727 = vunpack.c.h.b16 %v484
        %v728 = vunpack.c.l.b16 %v485
        %v729 = vunpack.c.h.b16 %v485
        %v730 = vunpack.c.l.b16 %v486
        %v731 = vunpack.c.h.b16 %v486
        %v732 = vunpack.c.l.b16 %v487
        %v733 = vunpack.c.h.b16 %v487
        %v734 = vunpack.c.l.b16 %v488
        %v735 = vunpack.c.h.b16 %v488
        %v736 = vunpack.c.l.b16 %v489
        %v737 = vunpack.c.h.b16 %v489
        %v738 = vunpack.c.l.b16 %v490
        %v739 = vunpack.c.h.b16 %v490
        %v740 = vunpack.c.l.b16 %v491
        %v741 = vunpack.c.h.b16 %v491
        %v742 = vunpack.c.l.b16 %v492
        %v743 = vunpack.c.h.b16 %v492
        %v744 = vunpack.c.l.b16 %v493
        %v745 = vunpack.c.h.b16 %v493
        %v746 = vunpack.c.l.b16 %v494
        %v747 = vunpack.c.h.b16 %v494
        %v748 = vunpack.c.l.b16 %v495
        %v749 = vunpack.c.h.b16 %v495
        %v750 = vunpack.c.l.b16 %v496
        %v751 = vunpack.c.h.b16 %v496
        %v752 = vunpack.c.l.b16 %v497
        %v753 = vunpack.c.h.b16 %v497
        %v754 = vpack.c.b16 %v630, %v626
        %v755 = vpack.c.b16 %v631, %v627
        %v756 = vpack.c.b16 %v632, %v628
        %v757 = vpack.c.b16 %v633, %v629
        %v758 = vpack.c.b16 %v638, %v634
        %v759 = vpack.c.b16 %v639, %v635
        %v760 = vpack.c.b16 %v640, %v636
        %v761 = vpack.c.b16 %v641, %v637
        %v762 = vpack.c.b16 %v646, %v642
        %v763 = vpack.c.b16 %v647, %v643
        %v764 = vpack.c.b16 %v648, %v644
        %v765 = vpack.c.b16 %v649, %v645
        %v766 = vpack.c.b16 %v654, %v650
        %v767 = vpack.c.b16 %v655, %v651
        %v768 = vpack.c.b16 %v656, %v652
        %v769 = vpack.c.b16 %v657, %v653
        %v770 = vpack.c.b16 %v662, %v658
        %v771 = vpack.c.b16 %v663, %v659
        %v772 = vpack.c.b16 %v664, %v660
        %v773 = vpack.c.b16 %v665, %v661
        %v774 = vpack.c.b16 %v670, %v666
        %v775 = vpack.c.b16 %v671, %v667
        %v776 = vpack.c.b16 %v672, %v668
        %v777 = vpack.c.b16 %v673, %v669
        %v778 = vpack.c.b16 %v678, %v674
        %v779 = vpack.c.b16 %v679, %v675
        %v780 = vpack.c.b16 %v680, %v676
        %v781 = vpack.c.b16 %v681, %v677
        %v782 = vpack.c.b16 %v686, %v682
        %v783 = vpack.c.b16 %v687, %v683
        %v784 = vpack.c.b16 %v688, %v684
        %v785 = vpack.c.b16 %v689, %v685
        %v786 = vpack.c.b16 %v694, %v690
        %v787 = vpack.c.b16 %v695, %v691
        %v788 = vpack.c.b16 %v696, %v692
        %v789 = vpack.c.b16 %v697, %v693
        %v790 = vpack.c.b16 %v702, %v698
        %v791 = vpack.c.b16 %v703, %v699
        %v792 = vpack.c.b16 %v704, %v700
        %v793 = vpack.c.b16 %v705, %v701
        %v794 = vpack.c.b16 %v710, %v706
        %v795 = vpack.c.b16 %v711, %v707
        %v796 = vpack.c.b16 %v712, %v708
        %v797 = vpack.c.b16 %v713, %v709
        %v798 = vpack.c.b16 %v718, %v714
        %v799 = vpack.c.b16 %v719, %v715
        %v800 = vpack.c.b16 %v720, %v716
        %v801 = vpack.c.b16 %v721, %v717
        %v802 = vpack.c.b16 %v726, %v722
        %v803 = vpack.c.b16 %v727, %v723
        %v804 = vpack.c.b16 %v728, %v724
        %v805 = vpack.c.b16 %v729, %v725
        %v806 = vpack.c.b16 %v734, %v730
        %v807 = vpack.c.b16 %v735, %v731
        %v808 = vpack.c.b16 %v736, %v732
        %v809 = vpack.c.b16 %v737, %v733
        %v810 = vpack.c.b16 %v742, %v738
        %v811 = vpack.c.b16 %v743, %v739
        %v812 = vpack.c.b16 %v744, %v740
        %v813 = vpack.c.b16 %v745, %v741
        %v814 = vpack.c.b16 %v750, %v746
        %v815 = vpack.c.b16 %v751, %v747
        %v816 = vpack.c.b16 %v752, %v748
        %v817 = vpack.c.b16 %v753, %v749
        %v946 = vunpack.c.l.b16 %v498
        %v947 = vunpack.c.h.b16 %v498
        %v948 = vunpack.c.l.b16 %v499
        %v949 = vunpack.c.h.b16 %v499
        %v950 = vunpack.c.l.b16 %v500
        %v951 = vunpack.c.h.b16 %v500
        %v952 = vunpack.c.l.b16 %v501
        %v953 = vunpack.c.h.b16 %v501
        %v954 = vunpack.c.l.b16 %v502
        %v955 = vunpack.c.h.b16 %v502
        %v956 = vunpack.c.l.b16 %v503
        %v957 = vunpack.c.h.b16 %v503
        %v958 = vunpack.c.l.b16 %v504
        %v959 = vunpack.c.h.b16 %v504
        %v960 = vunpack.c.l.b16 %v505
        %v961 = vunpack.c.h.b16 %v505
        %v962 = vunpack.c.l.b16 %v506
        %v963 = vunpack.c.h.b16 %v506
        %v964 = vunpack.c.l.b16 %v507
        %v965 = vunpack.c.h.b16 %v507
        %v966 = vunpack.c.l.b16 %v508
        %v967 = vunpack.c.h.b16 %v508
        %v968 = vunpack.c.l.b16 %v509
        %v969 = vunpack.c.h.b16 %v509
        %v970 = vunpack.c.l.b16 %v510
        %v971 = vunpack.c.h.b16 %v510
        %v972 = vunpack.c.l.b16 %v511
        %v973 = vunpack.c.h.b16 %v511
        %v974 = vunpack.c.l.b16 %v512
        %v975 = vunpack.c.h.b16 %v512
        %v976 = vunpack.c.l.b16 %v513
        %v977 = vunpack.c.h.b16 %v513
        %v978 = vunpack.c.l.b16 %v514
        %v979 = vunpack.c.h.b16 %v514
        %v980 = vunpack.c.l.b16 %v515
        %v981 = vunpack.c.h.b16 %v515
        %v982 = vunpack.c.l.b16 %v516
        %v983 = vunpack.c.h.b16 %v516
        %v984 = vunpack.c.l.b16 %v517
        %v985 = vunpack.c.h.b16 %v517
        %v986 = vunpack.c.l.b16 %v518
        %v987 = vunpack.c.h.b16 %v518
        %v988 = vunpack.c.l.b16 %v519
        %v989 = vunpack.c.h.b16 %v519
        %v990 = vunpack.c.l.b16 %v520
        %v991 = vunpack.c.h.b16 %v520
        %v992 = vunpack.c.l.b16 %v521
        %v993 = vunpack.c.h.b16 %v521
        %v994 = vunpack.c.l.b16 %v522
        %v995 = vunpack.c.h.b16 %v522
        %v996 = vunpack.c.l.b16 %v523
        %v997 = vunpack.c.h.b16 %v523
        %v998 = vunpack.c.l.b16 %v524
        %v999 = vunpack.c.h.b16 %v524
        %v1000 = vunpack.c.l.b16 %v525
        %v1001 = vunpack.c.h.b16 %v525
        %v1002 = vunpack.c.l.b16 %v526
        %v1003 = vunpack.c.h.b16 %v526
        %v1004 = vunpack.c.l.b16 %v527
        %v1005 = vunpack.c.h.b16 %v527
        %v1006 = vunpack.c.l.b16 %v528
        %v1007 = vunpack.c.h.b16 %v528
        %v1008 = vunpack.c.l.b16 %v529
        %v1009 = vunpack.c.h.b16 %v529
        %v1010 = vunpack.c.l.b16 %v530
        %v1011 = vunpack.c.h.b16 %v530
        %v1012 = vunpack.c.l.b16 %v531
        %v1013 = vunpack.c.h.b16 %v531
        %v1014 = vunpack.c.l.b16 %v532
        %v1015 = vunpack.c.h.b16 %v532
        %v1016 = vunpack.c.l.b16 %v533
        %v1017 = vunpack.c.h.b16 %v533
        %v1018 = vunpack.c.l.b16 %v534
        %v1019 = vunpack.c.h.b16 %v534
        %v1020 = vunpack.c.l.b16 %v535
        %v1021 = vunpack.c.h.b16 %v535
        %v1022 = vunpack.c.l.b16 %v536
        %v1023 = vunpack.c.h.b16 %v536
        %v1024 = vunpack.c.l.b16 %v537
        %v1025 = vunpack.c.h.b16 %v537
        %v1026 = vunpack.c.l.b16 %v538
        %v1027 = vunpack.c.h.b16 %v538
        %v1028 = vunpack.c.l.b16 %v539
        %v1029 = vunpack.c.h.b16 %v539
        %v1030 = vunpack.c.l.b16 %v540
        %v1031 = vunpack.c.h.b16 %v540
        %v1032 = vunpack.c.l.b16 %v541
        %v1033 = vunpack.c.h.b16 %v541
        %v1034 = vunpack.c.l.b16 %v542
        %v1035 = vunpack.c.h.b16 %v542
        %v1036 = vunpack.c.l.b16 %v543
        %v1037 = vunpack.c.h.b16 %v543
        %v1038 = vunpack.c.l.b16 %v544
        %v1039 = vunpack.c.h.b16 %v544
        %v1040 = vunpack.c.l.b16 %v545
        %v1041 = vunpack.c.h.b16 %v545
        %v1042 = vunpack.c.l.b16 %v546
        %v1043 = vunpack.c.h.b16 %v546
        %v1044 = vunpack.c.l.b16 %v547
        %v1045 = vunpack.c.h.b16 %v547
        %v1046 = vunpack.c.l.b16 %v548
        %v1047 = vunpack.c.h.b16 %v548
        %v1048 = vunpack.c.l.b16 %v549
        %v1049 = vunpack.c.h.b16 %v549
        %v1050 = vunpack.c.l.b16 %v550
        %v1051 = vunpack.c.h.b16 %v550
        %v1052 = vunpack.c.l.b16 %v551
        %v1053 = vunpack.c.h.b16 %v551
        %v1054 = vunpack.c.l.b16 %v552
        %v1055 = vunpack.c.h.b16 %v552
        %v1056 = vunpack.c.l.b16 %v553
        %v1057 = vunpack.c.h.b16 %v553
        %v1058 = vunpack.c.l.b16 %v554
        %v1059 = vunpack.c.h.b16 %v554
        %v1060 = vunpack.c.l.b16 %v555
        %v1061 = vunpack.c.h.b16 %v555
        %v1062 = vunpack.c.l.b16 %v556
        %v1063 = vunpack.c.h.b16 %v556
        %v1064 = vunpack.c.l.b16 %v557
        %v1065 = vunpack.c.h.b16 %v557
        %v1066 = vunpack.c.l.b16 %v558
        %v1067 = vunpack.c.h.b16 %v558
        %v1068 = vunpack.c.l.b16 %v559
        %v1069 = vunpack.c.h.b16 %v559
        %v1070 = vunpack.c.l.b16 %v560
        %v1071 = vunpack.c.h.b16 %v560
        %v1072 = vunpack.c.l.b16 %v561
        %v1073 = vunpack.c.h.b16 %v561
        %v1074 = vpack.c.b16 %v948, %v946
        %v1075 = vpack.c.b16 %v949, %v947
        %v1076 = vpack.c.b16 %v952, %v950
        %v1077 = vpack.c.b16 %v953, %v951
        %v1078 = vpack.c.b16 %v956, %v954
        %v1079 = vpack.c.b16 %v957, %v955
        %v1080 = vpack.c.b16 %v960, %v958
        %v1081 = vpack.c.b16 %v961, %v959
        %v1082 = vpack.c.b16 %v964, %v962
        %v1083 = vpack.c.b16 %v965, %v963
        %v1084 = vpack.c.b16 %v968, %v966
        %v1085 = vpack.c.b16 %v969, %v967
        %v1086 = vpack.c.b16 %v972, %v970
        %v1087 = vpack.c.b16 %v973, %v971
        %v1088 = vpack.c.b16 %v976, %v974
        %v1089 = vpack.c.b16 %v977, %v975
        %v1090 = vpack.c.b16 %v980, %v978
        %v1091 = vpack.c.b16 %v981, %v979
        %v1092 = vpack.c.b16 %v984, %v982
        %v1093 = vpack.c.b16 %v985, %v983
        %v1094 = vpack.c.b16 %v988, %v986
        %v1095 = vpack.c.b16 %v989, %v987
        %v1096 = vpack.c.b16 %v992, %v990
        %v1097 = vpack.c.b16 %v993, %v991
        %v1098 = vpack.c.b16 %v996, %v994
        %v1099 = vpack.c.b16 %v997, %v995
        %v1100 = vpack.c.b16 %v1000, %v998
        %v1101 = vpack.c.b16 %v1001, %v999
        %v1102 = vpack.c.b16 %v1004, %v1002
        %v1103 = vpack.c.b16 %v1005, %v1003
        %v1104 = vpack.c.b16 %v1008, %v1006
        %v1105 = vpack.c.b16 %v1009, %v1007
        %v1106 = vpack.c.b16 %v1012, %v1010
        %v1107 = vpack.c.b16 %v1013, %v1011
        %v1108 = vpack.c.b16 %v1016, %v1014
        %v1109 = vpack.c.b16 %v1017, %v1015
        %v1110 = vpack.c.b16 %v1020, %v1018
        %v1111 = vpack.c.b16 %v1021, %v1019
        %v1112 = vpack.c.b16 %v1024, %v1022
        %v1113 = vpack.c.b16 %v1025, %v1023
        %v1114 = vpack.c.b16 %v1028, %v1026
        %v1115 = vpack.c.b16 %v1029, %v1027
        %v1116 = vpack.c.b16 %v1032, %v1030
        %v1117 = vpack.c.b16 %v1033, %v1031
        %v1118 = vpack.c.b16 %v1036, %v1034
        %v1119 = vpack.c.b16 %v1037, %v1035
        %v1120 = vpack.c.b16 %v1040, %v1038
        %v1121 = vpack.c.b16 %v1041, %v1039
        %v1122 = vpack.c.b16 %v1044, %v1042
        %v1123 = vpack.c.b16 %v1045, %v1043
        %v1124 = vpack.c.b16 %v1048, %v1046
        %v1125 = vpack.c.b16 %v1049, %v1047
        %v1126 = vpack.c.b16 %v1052, %v1050
        %v1127 = vpack.c.b16 %v1053, %v1051
        %v1128 = vpack.c.b16 %v1056, %v1054
        %v1129 = vpack.c.b16 %v1057, %v1055
        %v1130 = vpack.c.b16 %v1060, %v1058
        %v1131 = vpack.c.b16 %v1061, %v1059
        %v1132 = vpack.c.b16 %v1064, %v1062
        %v1133 = vpack.c.b16 %v1065, %v1063
        %v1134 = vpack.c.b16 %v1068, %v1066
        %v1135 = vpack.c.b16 %v1069, %v1067
        %v1136 = vpack.c.b16 %v1072, %v1070
        %v1137 = vpack.c.b16 %v1073, %v1071
        %1202 = vmatprep.subr.bf16.mxu0 %v1075
        %1203 = vmatpush1.bf16.msra.mxu0 %v1074
        %1204 = vmatprep.subr.bf16.mxu0 %v1077
        %1205 = vmatpush1.bf16.msra.mxu0 %v1076
        %1206 = vmatprep.subr.bf16.mxu0 %v1079
        %1207 = vmatpush1.bf16.msra.mxu0 %v1078
        %1208 = vmatprep.subr.bf16.mxu0 %v1081
        %1209 = vmatpush1.bf16.msra.mxu0 %v1080
        %1210 = vmatprep.subr.bf16.mxu0 %v1083
        %1211 = vmatpush1.bf16.msra.mxu0 %v1082
        %1212 = vmatprep.subr.bf16.mxu0 %v1085
        %1213 = vmatpush1.bf16.msra.mxu0 %v1084
        %1214 = vmatprep.subr.bf16.mxu0 %v1087
        %1215 = vmatpush1.bf16.msra.mxu0 %v1086
        %1216 = vmatprep.subr.bf16.mxu0 %v1089
        %1217 = vmatpush1.bf16.msra.mxu0 %v1088
        %1218 = vmatprep.subr.bf16.mxu0 %v1091
        %1219 = vmatpush1.bf16.msra.mxu0 %v1090
        %1220 = vmatprep.subr.bf16.mxu0 %v1093
        %1221 = vmatpush1.bf16.msra.mxu0 %v1092
        %1222 = vmatprep.subr.bf16.mxu0 %v1095
        %1223 = vmatpush1.bf16.msra.mxu0 %v1094
        %1224 = vmatprep.subr.bf16.mxu0 %v1097
        %1225 = vmatpush1.bf16.msra.mxu0 %v1096
        %1226 = vmatprep.subr.bf16.mxu0 %v1099
        %1227 = vmatpush1.bf16.msra.mxu0 %v1098
        %1228 = vmatprep.subr.bf16.mxu0 %v1101
        %1229 = vmatpush1.bf16.msra.mxu0 %v1100
        %1230 = vmatprep.subr.bf16.mxu0 %v1103
        %1231 = vmatpush1.bf16.msra.mxu0 %v1102
        %1232 = vmatprep.subr.bf16.mxu0 %v1105
        %1233 = vmatpush1.bf16.msra.mxu0 %v1104
        %1234 = vmatprep.mubr.bf16.mxu0 %v755
        %1235 = vmatmul.mubr.bf16.gmra.mrb[0].mxu0 %v754
        %v1236 = vpop.f32.mrb[0].mxu0
        %v1237 = vadd.f32 0.0, %v1236
        %v1238 = vpop.f32.mrb[0].mxu0
        %v1239 = vadd.f32 0.0, %v1238
        %v1240 = vpop.f32.mrb[0].mxu0
        %v1241 = vadd.f32 0.0, %v1240
        %v1242 = vpop.f32.mrb[0].mxu0
        %v1243 = vadd.f32 0.0, %v1242
        %1244 = vmatprep.mubr.bf16.mxu0 %v759
        %1245 = vmatmul.mubr.bf16.gmra.mrb[0].mxu0 %v758
        %v1246 = vpop.f32.mrb[0].mxu0
        %v1247 = vadd.f32 0.0, %v1246
        %v1248 = vpop.f32.mrb[0].mxu0
        %v1249 = vadd.f32 0.0, %v1248
        %v1250 = vpop.f32.mrb[0].mxu0
        %v1251 = vadd.f32 0.0, %v1250
        %v1252 = vpop.f32.mrb[0].mxu0
        %v1253 = vadd.f32 0.0, %v1252
        %1254 = vmatprep.mubr.bf16.mxu0 %v763
        %1255 = vmatmul.mubr.bf16.gmra.mrb[0].mxu0 %v762
        %v1256 = vpop.f32.mrb[0].mxu0
        %v1257 = vadd.f32 0.0, %v1256
        %v1258 = vpop.f32.mrb[0].mxu0
        %v1259 = vadd.f32 0.0, %v1258
        %v1260 = vpop.f32.mrb[0].mxu0
        %v1261 = vadd.f32 0.0, %v1260
        %v1262 = vpop.f32.mrb[0].mxu0
        %v1263 = vadd.f32 0.0, %v1262
        %1264 = vmatprep.mubr.bf16.mxu0 %v767
        %1265 = vmatmul.mubr.bf16.gmra.mrb[0].mxu0 %v766
        %v1266 = vpop.f32.mrb[0].mxu0
        %v1267 = vadd.f32 0.0, %v1266
        %v1268 = vpop.f32.mrb[0].mxu0
        %v1269 = vadd.f32 0.0, %v1268
        %v1270 = vpop.f32.mrb[0].mxu0
        %v1271 = vadd.f32 0.0, %v1270
        %v1272 = vpop.f32.mrb[0].mxu0
        %v1273 = vadd.f32 0.0, %v1272
        %1274 = vmatprep.mubr.bf16.mxu0 %v771
        %1275 = vmatmul.mubr.bf16.gmra.mrb[0].mxu0 %v770
        %v1276 = vpop.f32.mrb[0].mxu0
        %v1277 = vadd.f32 0.0, %v1276
        %v1278 = vpop.f32.mrb[0].mxu0
        %v1279 = vadd.f32 0.0, %v1278
        %v1280 = vpop.f32.mrb[0].mxu0
        %v1281 = vadd.f32 0.0, %v1280
        %v1282 = vpop.f32.mrb[0].mxu0
        %v1283 = vadd.f32 0.0, %v1282
        %1284 = vmatprep.mubr.bf16.mxu0 %v775
        %1285 = vmatmul.mubr.bf16.gmra.mrb[0].mxu0 %v774
        %v1286 = vpop.f32.mrb[0].mxu0
        %v1287 = vadd.f32 0.0, %v1286
        %v1288 = vpop.f32.mrb[0].mxu0
        %v1289 = vadd.f32 0.0, %v1288
        %v1290 = vpop.f32.mrb[0].mxu0
        %v1291 = vadd.f32 0.0, %v1290
        %v1292 = vpop.f32.mrb[0].mxu0
        %v1293 = vadd.f32 0.0, %v1292
        %1294 = vmatprep.mubr.bf16.mxu0 %v779
        %1295 = vmatmul.mubr.bf16.gmra.mrb[0].mxu0 %v778
        %v1296 = vpop.f32.mrb[0].mxu0
        %v1297 = vadd.f32 0.0, %v1296
        %v1298 = vpop.f32.mrb[0].mxu0
        %v1299 = vadd.f32 0.0, %v1298
        %v1300 = vpop.f32.mrb[0].mxu0
        %v1301 = vadd.f32 0.0, %v1300
        %v1302 = vpop.f32.mrb[0].mxu0
        %v1303 = vadd.f32 0.0, %v1302
        %1304 = vmatprep.mubr.bf16.mxu0 %v783
        %1305 = vmatmul.mubr.bf16.gmra.mrb[0].mxu0 %v782
        %v1306 = vpop.f32.mrb[0].mxu0
        %v1307 = vadd.f32 0.0, %v1306
        %v1308 = vpop.f32.mrb[0].mxu0
        %v1309 = vadd.f32 0.0, %v1308
        %v1310 = vpop.f32.mrb[0].mxu0
        %v1311 = vadd.f32 0.0, %v1310
        %v1312 = vpop.f32.mrb[0].mxu0
        %v1313 = vadd.f32 0.0, %v1312
        %1314 = vmatprep.mubr.bf16.mxu0 %v787
        %1315 = vmatmul.mubr.bf16.gmra.mrb[0].mxu0 %v786
        %v1316 = vpop.f32.mrb[0].mxu0
        %v1317 = vadd.f32 0.0, %v1316
        %v1318 = vpop.f32.mrb[0].mxu0
        %v1319 = vadd.f32 0.0, %v1318
        %v1320 = vpop.f32.mrb[0].mxu0
        %v1321 = vadd.f32 0.0, %v1320
        %v1322 = vpop.f32.mrb[0].mxu0
        %v1323 = vadd.f32 0.0, %v1322
        %1324 = vmatprep.mubr.bf16.mxu0 %v791
        %1325 = vmatmul.mubr.bf16.gmra.mrb[0].mxu0 %v790
        %v1326 = vpop.f32.mrb[0].mxu0
        %v1327 = vadd.f32 0.0, %v1326
        %v1328 = vpop.f32.mrb[0].mxu0
        %v1329 = vadd.f32 0.0, %v1328
        %v1330 = vpop.f32.mrb[0].mxu0
        %v1331 = vadd.f32 0.0, %v1330
        %v1332 = vpop.f32.mrb[0].mxu0
        %v1333 = vadd.f32 0.0, %v1332
        %1334 = vmatprep.mubr.bf16.mxu0 %v795
        %1335 = vmatmul.mubr.bf16.gmra.mrb[0].mxu0 %v794
        %v1336 = vpop.f32.mrb[0].mxu0
        %v1337 = vadd.f32 0.0, %v1336
        %v1338 = vpop.f32.mrb[0].mxu0
        %v1339 = vadd.f32 0.0, %v1338
        %v1340 = vpop.f32.mrb[0].mxu0
        %v1341 = vadd.f32 0.0, %v1340
        %v1342 = vpop.f32.mrb[0].mxu0
        %v1343 = vadd.f32 0.0, %v1342
        %1344 = vmatprep.mubr.bf16.mxu0 %v799
        %1345 = vmatmul.mubr.bf16.gmra.mrb[0].mxu0 %v798
        %v1346 = vpop.f32.mrb[0].mxu0
        %v1347 = vadd.f32 0.0, %v1346
        %v1348 = vpop.f32.mrb[0].mxu0
        %v1349 = vadd.f32 0.0, %v1348
        %v1350 = vpop.f32.mrb[0].mxu0
        %v1351 = vadd.f32 0.0, %v1350
        %v1352 = vpop.f32.mrb[0].mxu0
        %v1353 = vadd.f32 0.0, %v1352
        %1354 = vmatprep.mubr.bf16.mxu0 %v803
        %1355 = vmatmul.mubr.bf16.gmra.mrb[0].mxu0 %v802
        %v1356 = vpop.f32.mrb[0].mxu0
        %v1357 = vadd.f32 0.0, %v1356
        %v1358 = vpop.f32.mrb[0].mxu0
        %v1359 = vadd.f32 0.0, %v1358
        %v1360 = vpop.f32.mrb[0].mxu0
        %v1361 = vadd.f32 0.0, %v1360
        %v1362 = vpop.f32.mrb[0].mxu0
        %v1363 = vadd.f32 0.0, %v1362
        %1364 = vmatprep.mubr.bf16.mxu0 %v807
        %1365 = vmatmul.mubr.bf16.gmra.mrb[0].mxu0 %v806
        %v1366 = vpop.f32.mrb[0].mxu0
        %v1367 = vadd.f32 0.0, %v1366
        %v1368 = vpop.f32.mrb[0].mxu0
        %v1369 = vadd.f32 0.0, %v1368
        %v1370 = vpop.f32.mrb[0].mxu0
        %v1371 = vadd.f32 0.0, %v1370
        %v1372 = vpop.f32.mrb[0].mxu0
        %v1373 = vadd.f32 0.0, %v1372
        %1374 = vmatprep.mubr.bf16.mxu0 %v811
        %1375 = vmatmul.mubr.bf16.gmra.mrb[0].mxu0 %v810
        %v1376 = vpop.f32.mrb[0].mxu0
        %v1377 = vadd.f32 0.0, %v1376
        %v1378 = vpop.f32.mrb[0].mxu0
        %v1379 = vadd.f32 0.0, %v1378
        %v1380 = vpop.f32.mrb[0].mxu0
        %v1381 = vadd.f32 0.0, %v1380
        %v1382 = vpop.f32.mrb[0].mxu0
        %v1383 = vadd.f32 0.0, %v1382
        %1384 = vmatprep.mubr.bf16.mxu0 %v815
        %1385 = vmatmul.mubr.bf16.gmra.mrb[0].mxu0 %v814
        %v1386 = vpop.f32.mrb[0].mxu0
        %v1387 = vadd.f32 0.0, %v1386
        %v1388 = vpop.f32.mrb[0].mxu0
        %v1389 = vadd.f32 0.0, %v1388
        %v1390 = vpop.f32.mrb[0].mxu0
        %v1391 = vadd.f32 0.0, %v1390
        %v1392 = vpop.f32.mrb[0].mxu0
        %v1393 = vadd.f32 0.0, %v1392
        %1394 = vdwg.mxu0
        %1395 = vmatprep.subr.bf16.mxu0 %v1107
        %1396 = vmatpush1.bf16.msra.mxu0 %v1106
        %1397 = vmatprep.subr.bf16.mxu0 %v1109
        %1398 = vmatpush1.bf16.msra.mxu0 %v1108
        %1399 = vmatprep.subr.bf16.mxu0 %v1111
        %1400 = vmatpush1.bf16.msra.mxu0 %v1110
        %1401 = vmatprep.subr.bf16.mxu0 %v1113
        %1402 = vmatpush1.bf16.msra.mxu0 %v1112
        %1403 = vmatprep.subr.bf16.mxu0 %v1115
        %1404 = vmatpush1.bf16.msra.mxu0 %v1114
        %1405 = vmatprep.subr.bf16.mxu0 %v1117
        %1406 = vmatpush1.bf16.msra.mxu0 %v1116
        %1407 = vmatprep.subr.bf16.mxu0 %v1119
        %1408 = vmatpush1.bf16.msra.mxu0 %v1118
        %1409 = vmatprep.subr.bf16.mxu0 %v1121
        %1410 = vmatpush1.bf16.msra.mxu0 %v1120
        %1411 = vmatprep.subr.bf16.mxu0 %v1123
        %1412 = vmatpush1.bf16.msra.mxu0 %v1122
        %1413 = vmatprep.subr.bf16.mxu0 %v1125
        %1414 = vmatpush1.bf16.msra.mxu0 %v1124
        %1415 = vmatprep.subr.bf16.mxu0 %v1127
        %1416 = vmatpush1.bf16.msra.mxu0 %v1126
        %1417 = vmatprep.subr.bf16.mxu0 %v1129
        %1418 = vmatpush1.bf16.msra.mxu0 %v1128
        %1419 = vmatprep.subr.bf16.mxu0 %v1131
        %1420 = vmatpush1.bf16.msra.mxu0 %v1130
        %1421 = vmatprep.subr.bf16.mxu0 %v1133
        %1422 = vmatpush1.bf16.msra.mxu0 %v1132
        %1423 = vmatprep.subr.bf16.mxu0 %v1135
        %1424 = vmatpush1.bf16.msra.mxu0 %v1134
        %1425 = vmatprep.subr.bf16.mxu0 %v1137
        %1426 = vmatpush1.bf16.msra.mxu0 %v1136
        %1427 = vmatprep.mubr.bf16.mxu0 %v757
        %1428 = vmatmul.mubr.bf16.gmra.mrb[0].mxu0 %v756
        %v1429 = vpop.f32.mrb[0].mxu0
        %v1430 = vadd.f32 %v1237, %v1429
        %v1431 = vpop.f32.mrb[0].mxu0
        %v1432 = vadd.f32 %v1239, %v1431
        %v1433 = vpop.f32.mrb[0].mxu0
        %v1434 = vadd.f32 %v1241, %v1433
        %v1435 = vpop.f32.mrb[0].mxu0
        %v1436 = vadd.f32 %v1243, %v1435
        %1437 = vmatprep.mubr.bf16.mxu0 %v761
        %1438 = vmatmul.mubr.bf16.gmra.mrb[0].mxu0 %v760
        %v1439 = vpop.f32.mrb[0].mxu0
        %v1440 = vadd.f32 %v1247, %v1439
        %v1441 = vpop.f32.mrb[0].mxu0
        %v1442 = vadd.f32 %v1249, %v1441
        %v1443 = vpop.f32.mrb[0].mxu0
        %v1444 = vadd.f32 %v1251, %v1443
        %v1445 = vpop.f32.mrb[0].mxu0
        %v1446 = vadd.f32 %v1253, %v1445
        %1447 = vmatprep.mubr.bf16.mxu0 %v765
        %1448 = vmatmul.mubr.bf16.gmra.mrb[0].mxu0 %v764
        %v1449 = vpop.f32.mrb[0].mxu0
        %v1450 = vadd.f32 %v1257, %v1449
        %v1451 = vpop.f32.mrb[0].mxu0
        %v1452 = vadd.f32 %v1259, %v1451
        %v1453 = vpop.f32.mrb[0].mxu0
        %v1454 = vadd.f32 %v1261, %v1453
        %v1455 = vpop.f32.mrb[0].mxu0
        %v1456 = vadd.f32 %v1263, %v1455
        %1457 = vmatprep.mubr.bf16.mxu0 %v769
        %1458 = vmatmul.mubr.bf16.gmra.mrb[0].mxu0 %v768
        %v1459 = vpop.f32.mrb[0].mxu0
        %v1460 = vadd.f32 %v1267, %v1459
        %v1461 = vpop.f32.mrb[0].mxu0
        %v1462 = vadd.f32 %v1269, %v1461
        %v1463 = vpop.f32.mrb[0].mxu0
        %v1464 = vadd.f32 %v1271, %v1463
        %v1465 = vpop.f32.mrb[0].mxu0
        %v1466 = vadd.f32 %v1273, %v1465
        %1467 = vmatprep.mubr.bf16.mxu0 %v773
        %1468 = vmatmul.mubr.bf16.gmra.mrb[0].mxu0 %v772
        %v1469 = vpop.f32.mrb[0].mxu0
        %v1470 = vadd.f32 %v1277, %v1469
        %v1471 = vpop.f32.mrb[0].mxu0
        %v1472 = vadd.f32 %v1279, %v1471
        %v1473 = vpop.f32.mrb[0].mxu0
        %v1474 = vadd.f32 %v1281, %v1473
        %v1475 = vpop.f32.mrb[0].mxu0
        %v1476 = vadd.f32 %v1283, %v1475
        %1477 = vmatprep.mubr.bf16.mxu0 %v777
        %1478 = vmatmul.mubr.bf16.gmra.mrb[0].mxu0 %v776
        %v1479 = vpop.f32.mrb[0].mxu0
        %v1480 = vadd.f32 %v1287, %v1479
        %v1481 = vpop.f32.mrb[0].mxu0
        %v1482 = vadd.f32 %v1289, %v1481
        %v1483 = vpop.f32.mrb[0].mxu0
        %v1484 = vadd.f32 %v1291, %v1483
        %v1485 = vpop.f32.mrb[0].mxu0
        %v1486 = vadd.f32 %v1293, %v1485
        %1487 = vmatprep.mubr.bf16.mxu0 %v781
        %1488 = vmatmul.mubr.bf16.gmra.mrb[0].mxu0 %v780
        %v1489 = vpop.f32.mrb[0].mxu0
        %v1490 = vadd.f32 %v1297, %v1489
        %v1491 = vpop.f32.mrb[0].mxu0
        %v1492 = vadd.f32 %v1299, %v1491
        %v1493 = vpop.f32.mrb[0].mxu0
        %v1494 = vadd.f32 %v1301, %v1493
        %v1495 = vpop.f32.mrb[0].mxu0
        %v1496 = vadd.f32 %v1303, %v1495
        %1497 = vmatprep.mubr.bf16.mxu0 %v785
        %1498 = vmatmul.mubr.bf16.gmra.mrb[0].mxu0 %v784
        %v1499 = vpop.f32.mrb[0].mxu0
        %v1500 = vadd.f32 %v1307, %v1499
        %v1501 = vpop.f32.mrb[0].mxu0
        %v1502 = vadd.f32 %v1309, %v1501
        %v1503 = vpop.f32.mrb[0].mxu0
        %v1504 = vadd.f32 %v1311, %v1503
        %v1505 = vpop.f32.mrb[0].mxu0
        %v1506 = vadd.f32 %v1313, %v1505
        %1507 = vmatprep.mubr.bf16.mxu0 %v789
        %1508 = vmatmul.mubr.bf16.gmra.mrb[0].mxu0 %v788
        %v1509 = vpop.f32.mrb[0].mxu0
        %v1510 = vadd.f32 %v1317, %v1509
        %v1511 = vpop.f32.mrb[0].mxu0
        %v1512 = vadd.f32 %v1319, %v1511
        %v1513 = vpop.f32.mrb[0].mxu0
        %v1514 = vadd.f32 %v1321, %v1513
        %v1515 = vpop.f32.mrb[0].mxu0
        %v1516 = vadd.f32 %v1323, %v1515
        %1517 = vmatprep.mubr.bf16.mxu0 %v793
        %1518 = vmatmul.mubr.bf16.gmra.mrb[0].mxu0 %v792
        %v1519 = vpop.f32.mrb[0].mxu0
        %v1520 = vadd.f32 %v1327, %v1519
        %v1521 = vpop.f32.mrb[0].mxu0
        %v1522 = vadd.f32 %v1329, %v1521
        %v1523 = vpop.f32.mrb[0].mxu0
        %v1524 = vadd.f32 %v1331, %v1523
        %v1525 = vpop.f32.mrb[0].mxu0
        %v1526 = vadd.f32 %v1333, %v1525
        %1527 = vmatprep.mubr.bf16.mxu0 %v797
        %1528 = vmatmul.mubr.bf16.gmra.mrb[0].mxu0 %v796
        %v1529 = vpop.f32.mrb[0].mxu0
        %v1530 = vadd.f32 %v1337, %v1529
        %v1531 = vpop.f32.mrb[0].mxu0
        %v1532 = vadd.f32 %v1339, %v1531
        %v1533 = vpop.f32.mrb[0].mxu0
        %v1534 = vadd.f32 %v1341, %v1533
        %v1535 = vpop.f32.mrb[0].mxu0
        %v1536 = vadd.f32 %v1343, %v1535
        %1537 = vmatprep.mubr.bf16.mxu0 %v801
        %1538 = vmatmul.mubr.bf16.gmra.mrb[0].mxu0 %v800
        %v1539 = vpop.f32.mrb[0].mxu0
        %v1540 = vadd.f32 %v1347, %v1539
        %v1541 = vpop.f32.mrb[0].mxu0
        %v1542 = vadd.f32 %v1349, %v1541
        %v1543 = vpop.f32.mrb[0].mxu0
        %v1544 = vadd.f32 %v1351, %v1543
        %v1545 = vpop.f32.mrb[0].mxu0
        %v1546 = vadd.f32 %v1353, %v1545
        %1547 = vmatprep.mubr.bf16.mxu0 %v805
        %1548 = vmatmul.mubr.bf16.gmra.mrb[0].mxu0 %v804
        %v1549 = vpop.f32.mrb[0].mxu0
        %v1550 = vadd.f32 %v1357, %v1549
        %v1551 = vpop.f32.mrb[0].mxu0
        %v1552 = vadd.f32 %v1359, %v1551
        %v1553 = vpop.f32.mrb[0].mxu0
        %v1554 = vadd.f32 %v1361, %v1553
        %v1555 = vpop.f32.mrb[0].mxu0
        %v1556 = vadd.f32 %v1363, %v1555
        %1557 = vmatprep.mubr.bf16.mxu0 %v809
        %1558 = vmatmul.mubr.bf16.gmra.mrb[0].mxu0 %v808
        %v1559 = vpop.f32.mrb[0].mxu0
        %v1560 = vadd.f32 %v1367, %v1559
        %v1561 = vpop.f32.mrb[0].mxu0
        %v1562 = vadd.f32 %v1369, %v1561
        %v1563 = vpop.f32.mrb[0].mxu0
        %v1564 = vadd.f32 %v1371, %v1563
        %v1565 = vpop.f32.mrb[0].mxu0
        %v1566 = vadd.f32 %v1373, %v1565
        %1567 = vmatprep.mubr.bf16.mxu0 %v813
        %1568 = vmatmul.mubr.bf16.gmra.mrb[0].mxu0 %v812
        %v1569 = vpop.f32.mrb[0].mxu0
        %v1570 = vadd.f32 %v1377, %v1569
        %v1571 = vpop.f32.mrb[0].mxu0
        %v1572 = vadd.f32 %v1379, %v1571
        %v1573 = vpop.f32.mrb[0].mxu0
        %v1574 = vadd.f32 %v1381, %v1573
        %v1575 = vpop.f32.mrb[0].mxu0
        %v1576 = vadd.f32 %v1383, %v1575
        %1577 = vmatprep.mubr.bf16.mxu0 %v817
        %1578 = vmatmul.mubr.bf16.gmra.mrb[0].mxu0 %v816
        %v1579 = vpop.f32.mrb[0].mxu0
        %v1580 = vadd.f32 %v1387, %v1579
        %v1581 = vpop.f32.mrb[0].mxu0
        %v1582 = vadd.f32 %v1389, %v1581
        %v1583 = vpop.f32.mrb[0].mxu0
        %v1584 = vadd.f32 %v1391, %v1583
        %v1585 = vpop.f32.mrb[0].mxu0
        %v1586 = vadd.f32 %v1393, %v1585
        %1587 = vdwg.mxu0
        %v1588 = vadd.f32 %v370, %v1430
        %v1589 = vadd.f32 %v371, %v1432
        %v1590 = vadd.f32 %v372, %v1434
        %v1591 = vadd.f32 %v373, %v1436
        %v1592 = vadd.f32 %v374, %v1440
        %v1593 = vadd.f32 %v375, %v1442
        %v1594 = vadd.f32 %v376, %v1444
        %v1595 = vadd.f32 %v377, %v1446
        %v1596 = vadd.f32 %v378, %v1450
        %v1597 = vadd.f32 %v379, %v1452
        %v1598 = vadd.f32 %v380, %v1454
        %v1599 = vadd.f32 %v381, %v1456
        %v1600 = vadd.f32 %v382, %v1460
        %v1601 = vadd.f32 %v383, %v1462
        %v1602 = vadd.f32 %v384, %v1464
        %v1603 = vadd.f32 %v385, %v1466
        %v1604 = vadd.f32 %v386, %v1470
        %v1605 = vadd.f32 %v387, %v1472
        %v1606 = vadd.f32 %v388, %v1474
        %v1607 = vadd.f32 %v389, %v1476
        %v1608 = vadd.f32 %v390, %v1480
        %v1609 = vadd.f32 %v391, %v1482
        %v1610 = vadd.f32 %v392, %v1484
        %v1611 = vadd.f32 %v393, %v1486
        %v1612 = vadd.f32 %v394, %v1490
        %v1613 = vadd.f32 %v395, %v1492
        %v1614 = vadd.f32 %v396, %v1494
        %v1615 = vadd.f32 %v397, %v1496
        %v1616 = vadd.f32 %v398, %v1500
        %v1617 = vadd.f32 %v399, %v1502
        %v1618 = vadd.f32 %v400, %v1504
        %v1619 = vadd.f32 %v401, %v1506
        %v1620 = vadd.f32 %v402, %v1510
        %v1621 = vadd.f32 %v403, %v1512
        %v1622 = vadd.f32 %v404, %v1514
        %v1623 = vadd.f32 %v405, %v1516
        %v1624 = vadd.f32 %v406, %v1520
        %v1625 = vadd.f32 %v407, %v1522
        %v1626 = vadd.f32 %v408, %v1524
        %v1627 = vadd.f32 %v409, %v1526
        %v1628 = vadd.f32 %v410, %v1530
        %v1629 = vadd.f32 %v411, %v1532
        %v1630 = vadd.f32 %v412, %v1534
        %v1631 = vadd.f32 %v413, %v1536
        %v1632 = vadd.f32 %v414, %v1540
        %v1633 = vadd.f32 %v415, %v1542
        %v1634 = vadd.f32 %v416, %v1544
        %v1635 = vadd.f32 %v417, %v1546
        %v1636 = vadd.f32 %v418, %v1550
        %v1637 = vadd.f32 %v419, %v1552
        %v1638 = vadd.f32 %v420, %v1554
        %v1639 = vadd.f32 %v421, %v1556
        %v1640 = vadd.f32 %v422, %v1560
        %v1641 = vadd.f32 %v423, %v1562
        %v1642 = vadd.f32 %v424, %v1564
        %v1643 = vadd.f32 %v425, %v1566
        %v1644 = vadd.f32 %v426, %v1570
        %v1645 = vadd.f32 %v427, %v1572
        %v1646 = vadd.f32 %v428, %v1574
        %v1647 = vadd.f32 %v429, %v1576
        %v1648 = vadd.f32 %v430, %v1580
        %v1649 = vadd.f32 %v431, %v1582
        %v1650 = vadd.f32 %v432, %v1584
        %v1651 = vadd.f32 %v433, %v1586
        %1652 = vst [vmem:[#allocation2] sm:$0xff] %v1588
        %1653 = vst [vmem:[#allocation2 + $0x8] sm:$0xff] %v1589
        %1654 = vst [vmem:[#allocation2 + $0x10] sm:$0xff] %v1590
        %1655 = vst [vmem:[#allocation2 + $0x18] sm:$0xff] %v1591
        %1656 = vst [vmem:[#allocation2 + $0x20] sm:$0xff] %v1592
        %1657 = vst [vmem:[#allocation2 + $0x28] sm:$0xff] %v1593
        %1658 = vst [vmem:[#allocation2 + $0x30] sm:$0xff] %v1594
        %1659 = vst [vmem:[#allocation2 + $0x38] sm:$0xff] %v1595
        %1660 = vst [vmem:[#allocation2 + $0x40] sm:$0xff] %v1596
        %1661 = vst [vmem:[#allocation2 + $0x48] sm:$0xff] %v1597
        %1662 = vst [vmem:[#allocation2 + $0x50] sm:$0xff] %v1598
        %1663 = vst [vmem:[#allocation2 + $0x58] sm:$0xff] %v1599
        %1664 = vst [vmem:[#allocation2 + $0x60] sm:$0xff] %v1600
        %1665 = vst [vmem:[#allocation2 + $0x68] sm:$0xff] %v1601
        %1666 = vst [vmem:[#allocation2 + $0x70] sm:$0xff] %v1602
        %1667 = vst [vmem:[#allocation2 + $0x78] sm:$0xff] %v1603
        %1668 = vst [vmem:[#allocation2 + $0x80] sm:$0xff] %v1604
        %1669 = vst [vmem:[#allocation2 + $0x88] sm:$0xff] %v1605
        %1670 = vst [vmem:[#allocation2 + $0x90] sm:$0xff] %v1606
        %1671 = vst [vmem:[#allocation2 + $0x98] sm:$0xff] %v1607
        %1672 = vst [vmem:[#allocation2 + $0xa0] sm:$0xff] %v1608
        %1673 = vst [vmem:[#allocation2 + $0xa8] sm:$0xff] %v1609
        %1674 = vst [vmem:[#allocation2 + $0xb0] sm:$0xff] %v1610
        %1675 = vst [vmem:[#allocation2 + $0xb8] sm:$0xff] %v1611
        %1676 = vst [vmem:[#allocation2 + $0xc0] sm:$0xff] %v1612
        %1677 = vst [vmem:[#allocation2 + $0xc8] sm:$0xff] %v1613
        %1678 = vst [vmem:[#allocation2 + $0xd0] sm:$0xff] %v1614
        %1679 = vst [vmem:[#allocation2 + $0xd8] sm:$0xff] %v1615
        %1680 = vst [vmem:[#allocation2 + $0xe0] sm:$0xff] %v1616
        %1681 = vst [vmem:[#allocation2 + $0xe8] sm:$0xff] %v1617
        %1682 = vst [vmem:[#allocation2 + $0xf0] sm:$0xff] %v1618
        %1683 = vst [vmem:[#allocation2 + $0xf8] sm:$0xff] %v1619
        %1684 = vst [vmem:[#allocation2 + $0x100] sm:$0xff] %v1620
        %1685 = vst [vmem:[#allocation2 + $0x108] sm:$0xff] %v1621
        %1686 = vst [vmem:[#allocation2 + $0x110] sm:$0xff] %v1622
        %1687 = vst [vmem:[#allocation2 + $0x118] sm:$0xff] %v1623
        %1688 = vst [vmem:[#allocation2 + $0x120] sm:$0xff] %v1624
        %1689 = vst [vmem:[#allocation2 + $0x128] sm:$0xff] %v1625
        %1690 = vst [vmem:[#allocation2 + $0x130] sm:$0xff] %v1626
        %1691 = vst [vmem:[#allocation2 + $0x138] sm:$0xff] %v1627
        %1692 = vst [vmem:[#allocation2 + $0x140] sm:$0xff] %v1628
        %1693 = vst [vmem:[#allocation2 + $0x148] sm:$0xff] %v1629
        %1694 = vst [vmem:[#allocation2 + $0x150] sm:$0xff] %v1630
        %1695 = vst [vmem:[#allocation2 + $0x158] sm:$0xff] %v1631
        %1696 = vst [vmem:[#allocation2 + $0x160] sm:$0xff] %v1632
        %1697 = vst [vmem:[#allocation2 + $0x168] sm:$0xff] %v1633
        %1698 = vst [vmem:[#allocation2 + $0x170] sm:$0xff] %v1634
        %1699 = vst [vmem:[#allocation2 + $0x178] sm:$0xff] %v1635
        %1700 = vst [vmem:[#allocation2 + $0x180] sm:$0xff] %v1636
        %1701 = vst [vmem:[#allocation2 + $0x188] sm:$0xff] %v1637
        %1702 = vst [vmem:[#allocation2 + $0x190] sm:$0xff] %v1638
        %1703 = vst [vmem:[#allocation2 + $0x198] sm:$0xff] %v1639
        %1704 = vst [vmem:[#allocation2 + $0x1a0] sm:$0xff] %v1640
        %1705 = vst [vmem:[#allocation2 + $0x1a8] sm:$0xff] %v1641
        %1706 = vst [vmem:[#allocation2 + $0x1b0] sm:$0xff] %v1642
        %1707 = vst [vmem:[#allocation2 + $0x1b8] sm:$0xff] %v1643
        %1708 = vst [vmem:[#allocation2 + $0x1c0] sm:$0xff] %v1644
        %1709 = vst [vmem:[#allocation2 + $0x1c8] sm:$0xff] %v1645
        %1710 = vst [vmem:[#allocation2 + $0x1d0] sm:$0xff] %v1646
        %1711 = vst [vmem:[#allocation2 + $0x1d8] sm:$0xff] %v1647
        %1712 = vst [vmem:[#allocation2 + $0x1e0] sm:$0xff] %v1648
        %1713 = vst [vmem:[#allocation2 + $0x1e8] sm:$0xff] %v1649
        %1714 = vst [vmem:[#allocation2 + $0x1f0] sm:$0xff] %v1650
        %1715 = vst [vmem:[#allocation2 + $0x1f8] sm:$0xff] %v1651
        // Predicated region
        $region49: #{tpu_custom_call.1} parent=31 // pred_check
          %p1716 = pneg %p302
        $region50: #{tpu_custom_call.1} parent=31 // pred_check_branch
          %1718 = sbr.rel (%p1716) target = $region52
        $region51: #{tpu_custom_call.1} parent=31 // pred_region
          %v1719 = vld [vmem:[#allocation2] sm:$0xff]
          %v1720 = vld [vmem:[#allocation2 + $0x8] sm:$0xff]
          %v1721 = vld [vmem:[#allocation2 + $0x10] sm:$0xff]
          %v1722 = vld [vmem:[#allocation2 + $0x18] sm:$0xff]
          %v1723 = vld [vmem:[#allocation2 + $0x20] sm:$0xff]
          %v1724 = vld [vmem:[#allocation2 + $0x28] sm:$0xff]
          %v1725 = vld [vmem:[#allocation2 + $0x30] sm:$0xff]
          %v1726 = vld [vmem:[#allocation2 + $0x38] sm:$0xff]
          %v1727 = vld [vmem:[#allocation2 + $0x40] sm:$0xff]
          %v1728 = vld [vmem:[#allocation2 + $0x48] sm:$0xff]
          %v1729 = vld [vmem:[#allocation2 + $0x50] sm:$0xff]
          %v1730 = vld [vmem:[#allocation2 + $0x58] sm:$0xff]
          %v1731 = vld [vmem:[#allocation2 + $0x60] sm:$0xff]
          %v1732 = vld [vmem:[#allocation2 + $0x68] sm:$0xff]
          %v1733 = vld [vmem:[#allocation2 + $0x70] sm:$0xff]
          %v1734 = vld [vmem:[#allocation2 + $0x78] sm:$0xff]
          %v1735 = vld [vmem:[#allocation2 + $0x80] sm:$0xff]
          %v1736 = vld [vmem:[#allocation2 + $0x88] sm:$0xff]
          %v1737 = vld [vmem:[#allocation2 + $0x90] sm:$0xff]
          %v1738 = vld [vmem:[#allocation2 + $0x98] sm:$0xff]
          %v1739 = vld [vmem:[#allocation2 + $0xa0] sm:$0xff]
          %v1740 = vld [vmem:[#allocation2 + $0xa8] sm:$0xff]
          %v1741 = vld [vmem:[#allocation2 + $0xb0] sm:$0xff]
          %v1742 = vld [vmem:[#allocation2 + $0xb8] sm:$0xff]
          %v1743 = vld [vmem:[#allocation2 + $0xc0] sm:$0xff]
          %v1744 = vld [vmem:[#allocation2 + $0xc8] sm:$0xff]
          %v1745 = vld [vmem:[#allocation2 + $0xd0] sm:$0xff]
          %v1746 = vld [vmem:[#allocation2 + $0xd8] sm:$0xff]
          %v1747 = vld [vmem:[#allocation2 + $0xe0] sm:$0xff]
          %v1748 = vld [vmem:[#allocation2 + $0xe8] sm:$0xff]
          %v1749 = vld [vmem:[#allocation2 + $0xf0] sm:$0xff]
          %v1750 = vld [vmem:[#allocation2 + $0xf8] sm:$0xff]
          %v1751 = vld [vmem:[#allocation2 + $0x100] sm:$0xff]
          %v1752 = vld [vmem:[#allocation2 + $0x108] sm:$0xff]
          %v1753 = vld [vmem:[#allocation2 + $0x110] sm:$0xff]
          %v1754 = vld [vmem:[#allocation2 + $0x118] sm:$0xff]
          %v1755 = vld [vmem:[#allocation2 + $0x120] sm:$0xff]
          %v1756 = vld [vmem:[#allocation2 + $0x128] sm:$0xff]
          %v1757 = vld [vmem:[#allocation2 + $0x130] sm:$0xff]
          %v1758 = vld [vmem:[#allocation2 + $0x138] sm:$0xff]
          %v1759 = vld [vmem:[#allocation2 + $0x140] sm:$0xff]
          %v1760 = vld [vmem:[#allocation2 + $0x148] sm:$0xff]
          %v1761 = vld [vmem:[#allocation2 + $0x150] sm:$0xff]
          %v1762 = vld [vmem:[#allocation2 + $0x158] sm:$0xff]
          %v1763 = vld [vmem:[#allocation2 + $0x160] sm:$0xff]
          %v1764 = vld [vmem:[#allocation2 + $0x168] sm:$0xff]
          %v1765 = vld [vmem:[#allocation2 + $0x170] sm:$0xff]
          %v1766 = vld [vmem:[#allocation2 + $0x178] sm:$0xff]
          %v1767 = vld [vmem:[#allocation2 + $0x180] sm:$0xff]
          %v1768 = vld [vmem:[#allocation2 + $0x188] sm:$0xff]
          %v1769 = vld [vmem:[#allocation2 + $0x190] sm:$0xff]
          %v1770 = vld [vmem:[#allocation2 + $0x198] sm:$0xff]
          %v1771 = vld [vmem:[#allocation2 + $0x1a0] sm:$0xff]
          %v1772 = vld [vmem:[#allocation2 + $0x1a8] sm:$0xff]
          %v1773 = vld [vmem:[#allocation2 + $0x1b0] sm:$0xff]
          %v1774 = vld [vmem:[#allocation2 + $0x1b8] sm:$0xff]
          %v1775 = vld [vmem:[#allocation2 + $0x1c0] sm:$0xff]
          %v1776 = vld [vmem:[#allocation2 + $0x1c8] sm:$0xff]
          %v1777 = vld [vmem:[#allocation2 + $0x1d0] sm:$0xff]
          %v1778 = vld [vmem:[#allocation2 + $0x1d8] sm:$0xff]
          %v1779 = vld [vmem:[#allocation2 + $0x1e0] sm:$0xff]
          %v1780 = vld [vmem:[#allocation2 + $0x1e8] sm:$0xff]
          %v1781 = vld [vmem:[#allocation2 + $0x1f0] sm:$0xff]
          %v1782 = vld [vmem:[#allocation2 + $0x1f8] sm:$0xff]
          %v1783 = vld [vmem:[%s262] sm:$0x3]
          %v1785 = vlaneseq
          %v1786 = vshrl.u32 %v1785, 7
          %v1787 = vsub.s32 0, %v1786
          %v1788 = vrot.slane %v1783, %v1787
          %v1789 = vlaneseq
          %v1790 = vshrl.u32 %v1789, 7
          %v1791 = vsub.s32 1, %v1790
          %v1792 = vrot.slane %v1783, %v1791
          %v1795 = vadd.f32 %v1719, %v1788
          %v1796 = vadd.f32 %v1720, %v1792
          %v1797 = vadd.f32 %v1721, %v1788
          %v1798 = vadd.f32 %v1722, %v1792
          %v1799 = vadd.f32 %v1723, %v1788
          %v1800 = vadd.f32 %v1724, %v1792
          %v1801 = vadd.f32 %v1725, %v1788
          %v1802 = vadd.f32 %v1726, %v1792
          %v1803 = vadd.f32 %v1727, %v1788
          %v1804 = vadd.f32 %v1728, %v1792
          %v1805 = vadd.f32 %v1729, %v1788
          %v1806 = vadd.f32 %v1730, %v1792
          %v1807 = vadd.f32 %v1731, %v1788
          %v1808 = vadd.f32 %v1732, %v1792
          %v1809 = vadd.f32 %v1733, %v1788
          %v1810 = vadd.f32 %v1734, %v1792
          %v1811 = vadd.f32 %v1735, %v1788
          %v1812 = vadd.f32 %v1736, %v1792
          %v1813 = vadd.f32 %v1737, %v1788
          %v1814 = vadd.f32 %v1738, %v1792
          %v1815 = vadd.f32 %v1739, %v1788
          %v1816 = vadd.f32 %v1740, %v1792
          %v1817 = vadd.f32 %v1741, %v1788
          %v1818 = vadd.f32 %v1742, %v1792
          %v1819 = vadd.f32 %v1743, %v1788
          %v1820 = vadd.f32 %v1744, %v1792
          %v1821 = vadd.f32 %v1745, %v1788
          %v1822 = vadd.f32 %v1746, %v1792
          %v1823 = vadd.f32 %v1747, %v1788
          %v1824 = vadd.f32 %v1748, %v1792
          %v1825 = vadd.f32 %v1749, %v1788
          %v1826 = vadd.f32 %v1750, %v1792
          %v1827 = vadd.f32 %v1751, %v1788
          %v1828 = vadd.f32 %v1752, %v1792
          %v1829 = vadd.f32 %v1753, %v1788
          %v1830 = vadd.f32 %v1754, %v1792
          %v1831 = vadd.f32 %v1755, %v1788
          %v1832 = vadd.f32 %v1756, %v1792
          %v1833 = vadd.f32 %v1757, %v1788
          %v1834 = vadd.f32 %v1758, %v1792
          %v1835 = vadd.f32 %v1759, %v1788
          %v1836 = vadd.f32 %v1760, %v1792
          %v1837 = vadd.f32 %v1761, %v1788
          %v1838 = vadd.f32 %v1762, %v1792
          %v1839 = vadd.f32 %v1763, %v1788
          %v1840 = vadd.f32 %v1764, %v1792
          %v1841 = vadd.f32 %v1765, %v1788
          %v1842 = vadd.f32 %v1766, %v1792
          %v1843 = vadd.f32 %v1767, %v1788
          %v1844 = vadd.f32 %v1768, %v1792
          %v1845 = vadd.f32 %v1769, %v1788
          %v1846 = vadd.f32 %v1770, %v1792
          %v1847 = vadd.f32 %v1771, %v1788
          %v1848 = vadd.f32 %v1772, %v1792
          %v1849 = vadd.f32 %v1773, %v1788
          %v1850 = vadd.f32 %v1774, %v1792
          %v1851 = vadd.f32 %v1775, %v1788
          %v1852 = vadd.f32 %v1776, %v1792
          %v1853 = vadd.f32 %v1777, %v1788
          %v1854 = vadd.f32 %v1778, %v1792
          %v1855 = vadd.f32 %v1779, %v1788
          %v1856 = vadd.f32 %v1780, %v1792
          %v1857 = vadd.f32 %v1781, %v1788
          %v1858 = vadd.f32 %v1782, %v1792
          %v1859 = vpack.c.bf16 %v1797, %v1795
          %v1860 = vpack.c.bf16 %v1798, %v1796
          %v1861 = vpack.c.bf16 %v1801, %v1799
          %v1862 = vpack.c.bf16 %v1802, %v1800
          %v1863 = vpack.c.bf16 %v1805, %v1803
          %v1864 = vpack.c.bf16 %v1806, %v1804
          %v1865 = vpack.c.bf16 %v1809, %v1807
          %v1866 = vpack.c.bf16 %v1810, %v1808
          %v1867 = vpack.c.bf16 %v1813, %v1811
          %v1868 = vpack.c.bf16 %v1814, %v1812
          %v1869 = vpack.c.bf16 %v1817, %v1815
          %v1870 = vpack.c.bf16 %v1818, %v1816
          %v1871 = vpack.c.bf16 %v1821, %v1819
          %v1872 = vpack.c.bf16 %v1822, %v1820
          %v1873 = vpack.c.bf16 %v1825, %v1823
          %v1874 = vpack.c.bf16 %v1826, %v1824
          %v1875 = vpack.c.bf16 %v1829, %v1827
          %v1876 = vpack.c.bf16 %v1830, %v1828
          %v1877 = vpack.c.bf16 %v1833, %v1831
          %v1878 = vpack.c.bf16 %v1834, %v1832
          %v1879 = vpack.c.bf16 %v1837, %v1835
          %v1880 = vpack.c.bf16 %v1838, %v1836
          %v1881 = vpack.c.bf16 %v1841, %v1839
          %v1882 = vpack.c.bf16 %v1842, %v1840
          %v1883 = vpack.c.bf16 %v1845, %v1843
          %v1884 = vpack.c.bf16 %v1846, %v1844
          %v1885 = vpack.c.bf16 %v1849, %v1847
          %v1886 = vpack.c.bf16 %v1850, %v1848
          %v1887 = vpack.c.bf16 %v1853, %v1851
          %v1888 = vpack.c.bf16 %v1854, %v1852
          %v1889 = vpack.c.bf16 %v1857, %v1855
          %v1890 = vpack.c.bf16 %v1858, %v1856
          %v1923 = vunpack.c.l.b16 %v1859
          %v1924 = vunpack.c.l.b16 %v1860
          %v1925 = vunpack.c.h.b16 %v1859
          %v1926 = vunpack.c.h.b16 %v1860
          %v1927 = vunpack.c.l.b16 %v1861
          %v1928 = vunpack.c.l.b16 %v1862
          %v1929 = vunpack.c.h.b16 %v1861
          %v1930 = vunpack.c.h.b16 %v1862
          %v1931 = vunpack.c.l.b16 %v1863
          %v1932 = vunpack.c.l.b16 %v1864
          %v1933 = vunpack.c.h.b16 %v1863
          %v1934 = vunpack.c.h.b16 %v1864
          %v1935 = vunpack.c.l.b16 %v1865
          %v1936 = vunpack.c.l.b16 %v1866
          %v1937 = vunpack.c.h.b16 %v1865
          %v1938 = vunpack.c.h.b16 %v1866
          %v1939 = vunpack.c.l.b16 %v1867
          %v1940 = vunpack.c.l.b16 %v1868
          %v1941 = vunpack.c.h.b16 %v1867
          %v1942 = vunpack.c.h.b16 %v1868
          %v1943 = vunpack.c.l.b16 %v1869
          %v1944 = vunpack.c.l.b16 %v1870
          %v1945 = vunpack.c.h.b16 %v1869
          %v1946 = vunpack.c.h.b16 %v1870
          %v1947 = vunpack.c.l.b16 %v1871
          %v1948 = vunpack.c.l.b16 %v1872
          %v1949 = vunpack.c.h.b16 %v1871
          %v1950 = vunpack.c.h.b16 %v1872
          %v1951 = vunpack.c.l.b16 %v1873
          %v1952 = vunpack.c.l.b16 %v1874
          %v1953 = vunpack.c.h.b16 %v1873
          %v1954 = vunpack.c.h.b16 %v1874
          %v1955 = vunpack.c.l.b16 %v1875
          %v1956 = vunpack.c.l.b16 %v1876
          %v1957 = vunpack.c.h.b16 %v1875
          %v1958 = vunpack.c.h.b16 %v1876
          %v1959 = vunpack.c.l.b16 %v1877
          %v1960 = vunpack.c.l.b16 %v1878
          %v1961 = vunpack.c.h.b16 %v1877
          %v1962 = vunpack.c.h.b16 %v1878
          %v1963 = vunpack.c.l.b16 %v1879
          %v1964 = vunpack.c.l.b16 %v1880
          %v1965 = vunpack.c.h.b16 %v1879
          %v1966 = vunpack.c.h.b16 %v1880
          %v1967 = vunpack.c.l.b16 %v1881
          %v1968 = vunpack.c.l.b16 %v1882
          %v1969 = vunpack.c.h.b16 %v1881
          %v1970 = vunpack.c.h.b16 %v1882
          %v1971 = vunpack.c.l.b16 %v1883
          %v1972 = vunpack.c.l.b16 %v1884
          %v1973 = vunpack.c.h.b16 %v1883
          %v1974 = vunpack.c.h.b16 %v1884
          %v1975 = vunpack.c.l.b16 %v1885
          %v1976 = vunpack.c.l.b16 %v1886
          %v1977 = vunpack.c.h.b16 %v1885
          %v1978 = vunpack.c.h.b16 %v1886
          %v1979 = vunpack.c.l.b16 %v1887
          %v1980 = vunpack.c.l.b16 %v1888
          %v1981 = vunpack.c.h.b16 %v1887
          %v1982 = vunpack.c.h.b16 %v1888
          %v1983 = vunpack.c.l.b16 %v1889
          %v1984 = vunpack.c.l.b16 %v1890
          %v1985 = vunpack.c.h.b16 %v1889
          %v1986 = vunpack.c.h.b16 %v1890
          %v1987 = vpack.c.b16 %v1924, %v1923
          %v1988 = vpack.c.b16 %v1926, %v1925
          %v1989 = vpack.c.b16 %v1928, %v1927
          %v1990 = vpack.c.b16 %v1930, %v1929
          %v1991 = vpack.c.b16 %v1932, %v1931
          %v1992 = vpack.c.b16 %v1934, %v1933
          %v1993 = vpack.c.b16 %v1936, %v1935
          %v1994 = vpack.c.b16 %v1938, %v1937
          %v1995 = vpack.c.b16 %v1940, %v1939
          %v1996 = vpack.c.b16 %v1942, %v1941
          %v1997 = vpack.c.b16 %v1944, %v1943
          %v1998 = vpack.c.b16 %v1946, %v1945
          %v1999 = vpack.c.b16 %v1948, %v1947
          %v2000 = vpack.c.b16 %v1950, %v1949
          %v2001 = vpack.c.b16 %v1952, %v1951
          %v2002 = vpack.c.b16 %v1954, %v1953
          %v2003 = vpack.c.b16 %v1956, %v1955
          %v2004 = vpack.c.b16 %v1958, %v1957
          %v2005 = vpack.c.b16 %v1960, %v1959
          %v2006 = vpack.c.b16 %v1962, %v1961
          %v2007 = vpack.c.b16 %v1964, %v1963
          %v2008 = vpack.c.b16 %v1966, %v1965
          %v2009 = vpack.c.b16 %v1968, %v1967
          %v2010 = vpack.c.b16 %v1970, %v1969
          %v2011 = vpack.c.b16 %v1972, %v1971
          %v2012 = vpack.c.b16 %v1974, %v1973
          %v2013 = vpack.c.b16 %v1976, %v1975
          %v2014 = vpack.c.b16 %v1978, %v1977
          %v2015 = vpack.c.b16 %v1980, %v1979
          %v2016 = vpack.c.b16 %v1982, %v1981
          %v2017 = vpack.c.b16 %v1984, %v1983
          %v2018 = vpack.c.b16 %v1986, %v1985
          %2051 = vst [vmem:[%s294] sm:$0xff] %v1987
          %2052 = vst [vmem:[%s294 + $0x8] sm:$0xff] %v1988
          %2053 = vst [vmem:[%s294 + $0x10] sm:$0xff] %v1989
          %2054 = vst [vmem:[%s294 + $0x18] sm:$0xff] %v1990
          %2055 = vst [vmem:[%s294 + $0x20] sm:$0xff] %v1991
          %2056 = vst [vmem:[%s294 + $0x28] sm:$0xff] %v1992
          %2057 = vst [vmem:[%s294 + $0x30] sm:$0xff] %v1993
          %2058 = vst [vmem:[%s294 + $0x38] sm:$0xff] %v1994
          %2059 = vst [vmem:[%s294 + $0x40] sm:$0xff] %v1995
          %2060 = vst [vmem:[%s294 + $0x48] sm:$0xff] %v1996
          %2061 = vst [vmem:[%s294 + $0x50] sm:$0xff] %v1997
          %2062 = vst [vmem:[%s294 + $0x58] sm:$0xff] %v1998
          %2063 = vst [vmem:[%s294 + $0x60] sm:$0xff] %v1999
          %2064 = vst [vmem:[%s294 + $0x68] sm:$0xff] %v2000
          %2065 = vst [vmem:[%s294 + $0x70] sm:$0xff] %v2001
          %2066 = vst [vmem:[%s294 + $0x78] sm:$0xff] %v2002
          %2067 = vst [vmem:[%s294 + $0x80] sm:$0xff] %v2003
          %2068 = vst [vmem:[%s294 + $0x88] sm:$0xff] %v2004
          %2069 = vst [vmem:[%s294 + $0x90] sm:$0xff] %v2005
          %2070 = vst [vmem:[%s294 + $0x98] sm:$0xff] %v2006
          %2071 = vst [vmem:[%s294 + $0xa0] sm:$0xff] %v2007
          %2072 = vst [vmem:[%s294 + $0xa8] sm:$0xff] %v2008
          %2073 = vst [vmem:[%s294 + $0xb0] sm:$0xff] %v2009
          %2074 = vst [vmem:[%s294 + $0xb8] sm:$0xff] %v2010
          %2075 = vst [vmem:[%s294 + $0xc0] sm:$0xff] %v2011
          %2076 = vst [vmem:[%s294 + $0xc8] sm:$0xff] %v2012
          %2077 = vst [vmem:[%s294 + $0xd0] sm:$0xff] %v2013
          %2078 = vst [vmem:[%s294 + $0xd8] sm:$0xff] %v2014
          %2079 = vst [vmem:[%s294 + $0xe0] sm:$0xff] %v2015
          %2080 = vst [vmem:[%s294 + $0xe8] sm:$0xff] %v2016
          %2081 = vst [vmem:[%s294 + $0xf0] sm:$0xff] %v2017
          %2082 = vst [vmem:[%s294 + $0xf8] sm:$0xff] %v2018
        $region52: #{tpu_custom_call.1} parent=31 // pred_fallthru
          _
        %s2083 = sand.u32 %s134, 1
        %s2084 = scalar_lea.sflag [#allocation5], %s2083
        %s2085 = sand.u32 %s134, 1
        %s2086 = smul.addr %s2085, 256
        %s2087 = scalar_lea.vmem [#allocation9], %s2086
        // Predicated region
        $region53: #{tpu_custom_call.1} parent=31 // pred_check
          %p2088 = pneg %p144
        $region54: #{tpu_custom_call.1} parent=31 // pred_check_branch
          %2090 = sbr.rel (%p2088) target = $region56
        $region55: #{tpu_custom_call.1} parent=31 // pred_region
          %s2091 = smul.u32 32, %s28
          %s2092 = smul.u32 2, %s29
          %s2094 = ssub.s32 4096, 4096
          %2095 = vsyncadd %s2084, %s2094
          %s2096 = smul.addr %s2091, 4
          %s2097 = sadd.s32 %s2092, %s2096
          %s2098 = smul.addr %s2097, 64
          %s2099 = scalar_lea.hbm %s3, %s2098
          %s2100 = sshll.u32 %s2087, 4
          %s2101 = int_to_ptr.vmem [resolvable:$true] %s2100
          %2106 = dma.vmem_to_hbm [thread:$0]  %s2101, 4096, %s2099, %s2084, 128, 256, 8
        $region56: #{tpu_custom_call.1} parent=31 // pred_fallthru
          _
      $region32: #{tpu_custom_call.1} parent=5 // pred_fallthru
        _
      %p2107 = scmp.le.s32.totalorder 2, %s18
      // Predicated region
      $region57: #{tpu_custom_call.1} parent=5 // pred_check
        %p2108 = pneg %p2107
      $region58: #{tpu_custom_call.1} parent=5 // pred_check_branch
        %2110 = sbr.rel (%p2108) target = $region60
      $region59: #{tpu_custom_call.1} parent=5 // pred_region
        %s2111 = ssub.s32 %s18, 2
        // Predicated region
        $region61: #{tpu_custom_call.1} parent=59 // pred_check
          %p2112 = pneg %p150
        $region62: #{tpu_custom_call.1} parent=59 // pred_check_branch
          %2114 = sbr.rel (%p2112) target = $region64
        $region63: #{tpu_custom_call.1} parent=59 // pred_region
          %s2115 = sand.u32 %s135, 1
          %s2116 = scalar_lea.sflag [#allocation5], %s2115
          %s2117 = sand.u32 %s135, 1
          %s2118 = smul.addr %s2117, 256
          %s2119 = scalar_lea.vmem [#allocation9], %s2118
          %2120 = dma.done %s2116, 4096
        $region64: #{tpu_custom_call.1} parent=59 // pred_fallthru
          _
      $region60: #{tpu_custom_call.1} parent=5 // pred_fallthru
        _
    $region6: #{tpu_custom_call.1} parent=1 // loop_footer
      %s22 = sadd.s32 1, %s18
    $region7: #{tpu_custom_call.1} parent=1 // loop_footer_branch
      %17 = sbr.rel target = $region3
    $region8: #{tpu_custom_call.1} parent=1 // loop_exit
      _
    %2121 = vsyncpa [#allocation4], 1
    %s2122 = scalar_lea.sflag [#allocation4], 1
    %2123 = vsyncpa %s2122, 1
    %2124 = vsyncpa [#allocation7], 1
    %s2125 = scalar_lea.sflag [#allocation7], 1
    %2126 = vsyncpa %s2125, 1
    %2127 = vsyncpa [#allocation5], 1
    %s2128 = scalar_lea.sflag [#allocation5], 1
    %2129 = vsyncpa %s2128, 1

</llo_original>
